<compile_context>
chip_gen: v7x
topology: tpu7x:2x2x1
jax: 0.10.0
libtpu: 0.0.40
codegen_flags: <defaults>
</compile_context>

<pallas_src>
import functools
import math

import jax
import jax.numpy as jnp
import numpy as np
from jax.experimental import pallas as pl
from jax.experimental.pallas import tpu as pltpu

EPS = 1e-6
NEG_INF = -1e9


def _layer_norm(v, g, b, eps=EPS):
    # Matches the PyTorch reference LayerNorm exactly:
    #   x.std(-1) is the UNBIASED std (ddof=1) and eps is added to std (not var).
    mean = jnp.mean(v, axis=-1, keepdims=True)
    c = v - mean
    var = jnp.sum(c * c, axis=-1, keepdims=True) * (1.0 / (v.shape[-1] - 1))
    std = jnp.sqrt(var)
    return c * pl.reciprocal(std + eps, approx=True) * g + b


def encoder_layer_kernel(x_ref, bias_ref,
                         ln1_g_ref, ln1_b_ref,
                         wq_ref, bq_ref, wk_ref, bk_ref, wv_ref, bv_ref,
                         wo_ref, bo_ref,
                         ln2_g_ref, ln2_b_ref,
                         w1_ref, b1_ref, w2_ref, b2_ref,
                         out_ref,
                         k_scratch, v_scratch,
                         *, num_heads, tq):
    qi = pl.program_id(1)
    S, D = k_scratch.shape
    dk = D // num_heads
    scale = 1.0 / math.sqrt(dk)

    ln1_g = ln1_g_ref[...]
    ln1_b = ln1_b_ref[...]

    # ---- K / V for the whole sequence: computed once per batch element and
    #      kept resident in bf16 VMEM scratch across all query tiles. ----
    @pl.when(qi == 0)
    def _():
        xn_full = _layer_norm(x_ref[0], ln1_g, ln1_b).astype(jnp.bfloat16)
        k = jnp.dot(xn_full, wk_ref[...],
                    preferred_element_type=jnp.float32) + bk_ref[...]
        v = jnp.dot(xn_full, wv_ref[...],
                    preferred_element_type=jnp.float32) + bv_ref[...]
        k_scratch[...] = k.astype(jnp.bfloat16)
        v_scratch[...] = v.astype(jnp.bfloat16)

    # ---- sublayer 0: pre-LN multi-head self-attention + residual (query tile) ----
    q_start = pl.multiple_of(qi * tq, tq)
    x_t = x_ref[0, pl.ds(q_start, tq), :]              # [TQ, D] f32
    xn_t = _layer_norm(x_t, ln1_g, ln1_b)
    q = jnp.dot(xn_t.astype(jnp.bfloat16), wq_ref[...],
                preferred_element_type=jnp.float32) + bq_ref[...]
    q = (q * scale).astype(jnp.bfloat16)               # pre-scale q once

    bias = bias_ref[0]                                  # [1, S] additive mask bias
    k_all = k_scratch[...]                              # [S, D] bf16
    v_all = v_scratch[...]                              # [S, D] bf16

    attn = jnp.zeros((tq, D), jnp.float32)
    for h in range(num_heads):                          # static head loop
        lo, hi = h * dk, (h + 1) * dk
        s = jax.lax.dot_general(q[:, lo:hi], k_all[:, lo:hi],
                                (((1,), (1,)), ((), ())),
                                preferred_element_type=jnp.float32) + bias
        s = s - jnp.max(s, axis=-1, keepdims=True)
        p = jnp.exp(s)
        p = p * pl.reciprocal(jnp.sum(p, axis=-1, keepdims=True), approx=True)
        o_h = jnp.dot(p.astype(jnp.bfloat16), v_all[:, lo:hi],
                      preferred_element_type=jnp.float32)        # [TQ, dk]
        # accumulate through the output projection instead of concatenating heads
        attn = attn + jnp.dot(o_h.astype(jnp.bfloat16), wo_ref[lo:hi, :],
                              preferred_element_type=jnp.float32)
    x1 = x_t + attn + bo_ref[...]                        # dropout p=0 -> identity

    # ---- sublayer 1: pre-LN position-wise feed forward + residual ----
    xn2 = _layer_norm(x1, ln2_g_ref[...], ln2_b_ref[...]).astype(jnp.bfloat16)
    h1 = jnp.dot(xn2, w1_ref[...], preferred_element_type=jnp.float32) + b1_ref[...]
    h1 = jnp.maximum(h1, 0.0).astype(jnp.bfloat16)       # ReLU
    ffn = jnp.dot(h1, w2_ref[...], preferred_element_type=jnp.float32) + b2_ref[...]
    out_ref[0] = (x1 + ffn).astype(out_ref.dtype)


def _pick_tq(S):
    for cand in (256, 128, 64, 32, 16, 8):
        if S >= cand and S % cand == 0:
            return cand
    return S


def encoder_layer(x, mask, params, num_heads):
    B, S, D = x.shape
    d_ff = params["w1"].shape[1]
    tq = _pick_tq(S)
    n_q = S // tq

    # Additive attention-mask bias (0.0 where attend, -1e9 where padded),
    # precomputed once here instead of a per-head compare+select in the kernel.
    mask_bias = jnp.where(mask == 0.0, NEG_INF, 0.0).astype(jnp.float32)

    # Weights in bf16 at the MXU boundary (halves weight DMA / VMEM);
    # biases and LayerNorm params stay f32.
    bf16 = jnp.bfloat16
    wq = params["wq"].astype(bf16)
    wk = params["wk"].astype(bf16)
    wv = params["wv"].astype(bf16)
    wo = params["wo"].astype(bf16)
    w1 = params["w1"].astype(bf16)
    w2 = params["w2"].astype(bf16)

    def bcast(shape):
        zeros = (0,) * len(shape)
        return pl.BlockSpec(shape, lambda b, qi, _z=zeros: _z)

    in_specs = [
        pl.BlockSpec((1, S, D), lambda b, qi: (b, 0, 0)),   # x (full seq per batch)
        pl.BlockSpec((1, 1, S), lambda b, qi: (b, 0, 0)),   # additive mask bias
        bcast((1, D)), bcast((1, D)),                        # ln1 gamma / beta
        bcast((D, D)), bcast((1, D)),                        # wq, bq
        bcast((D, D)), bcast((1, D)),                        # wk, bk
        bcast((D, D)), bcast((1, D)),                        # wv, bv
        bcast((D, D)), bcast((1, D)),                        # wo, bo
        bcast((1, D)), bcast((1, D)),                        # ln2 gamma / beta
        bcast((D, d_ff)), bcast((1, d_ff)),                  # w1, b1
        bcast((d_ff, D)), bcast((1, D)),                     # w2, b2
    ]

    # Explicit VMEM budget: double-buffered blocks + K/V scratch + headroom,
    # clamped to stay under the v7x 64 MiB physical VMEM.
    block_bytes = (S * D * 4 + S * 4                         # x block + mask block
                   + (4 * D * D + 2 * D * d_ff) * 2          # bf16 weights
                   + (9 * D + d_ff) * 4                      # biases + LN params
                   + tq * D * 4)                             # output tile
    scratch_bytes = 2 * S * D * 2                            # bf16 K/V scratch
    vmem_limit = int(min(max(2 * block_bytes + scratch_bytes + (4 << 20), 32 << 20),
                         64 << 20))

    kernel = functools.partial(encoder_layer_kernel, num_heads=num_heads, tq=tq)
    return pl.pallas_call(
        kernel,
        out_shape=jax.ShapeDtypeStruct((B, S, D), x.dtype),
        grid_spec=pltpu.PrefetchScalarGridSpec(
            num_scalar_prefetch=0,
            grid=(B, n_q),
            in_specs=in_specs,
            out_specs=pl.BlockSpec((1, tq, D), lambda b, qi: (b, qi, 0)),
            scratch_shapes=[pltpu.VMEM((S, D), jnp.bfloat16),   # K
                            pltpu.VMEM((S, D), jnp.bfloat16)],  # V
        ),
        compiler_params=pltpu.CompilerParams(
            dimension_semantics=("parallel", "arbitrary"),
            vmem_limit_bytes=vmem_limit,
        ),
    )(x, mask_bias,
      params["ln1_g"], params["ln1_b"],
      wq, params["bq"], wk, params["bk"],
      wv, params["bv"], wo, params["bo"],
      params["ln2_g"], params["ln2_b"],
      w1, params["b1"], w2, params["b2"])


def reference(x, mask, p, num_heads):
    """Pure-JAX (f32) reference mirroring the PyTorch forward."""
    def ln(v, g, b):
        mean = v.mean(-1, keepdims=True)
        std = jnp.sqrt(((v - mean) ** 2).sum(-1, keepdims=True) / (v.shape[-1] - 1))
        return g * (v - mean) / (std + EPS) + b

    B, S, D = x.shape
    dk = D // num_heads
    xn = ln(x, p["ln1_g"], p["ln1_b"])
    q = (xn @ p["wq"] + p["bq"]).reshape(B, S, num_heads, dk).transpose(0, 2, 1, 3)
    k = (xn @ p["wk"] + p["bk"]).reshape(B, S, num_heads, dk).transpose(0, 2, 1, 3)
    v = (xn @ p["wv"] + p["bv"]).reshape(B, S, num_heads, dk).transpose(0, 2, 1, 3)
    s = jnp.einsum("bhqd,bhkd->bhqk", q, k) / math.sqrt(dk)
    s = jnp.where(mask[:, None, :, :] == 0.0, NEG_INF, s)
    a = jax.nn.softmax(s, axis=-1)
    o = jnp.einsum("bhqk,bhkd->bhqd", a, v).transpose(0, 2, 1, 3).reshape(B, S, D)
    x1 = x + (o @ p["wo"] + p["bo"])
    xn2 = ln(x1, p["ln2_g"], p["ln2_b"])
    ffn = jnp.maximum(xn2 @ p["w1"] + p["b1"], 0.0) @ p["w2"] + p["b2"]
    return x1 + ffn


def init_params(key, D, d_ff):
    keys = jax.random.split(key, 8)
    s = 0.1
    return {
        "ln1_g": jnp.ones((1, D), jnp.float32),
        "ln1_b": jnp.zeros((1, D), jnp.float32),
        "wq": jax.random.normal(keys[0], (D, D), jnp.float32) * s,
        "bq": jax.random.normal(keys[1], (1, D), jnp.float32) * s,
        "wk": jax.random.normal(keys[2], (D, D), jnp.float32) * s,
        "bk": jnp.zeros((1, D), jnp.float32),
        "wv": jax.random.normal(keys[3], (D, D), jnp.float32) * s,
        "bv": jnp.zeros((1, D), jnp.float32),
        "wo": jax.random.normal(keys[4], (D, D), jnp.float32) * s,
        "bo": jnp.zeros((1, D), jnp.float32),
        "ln2_g": jnp.ones((1, D), jnp.float32),
        "ln2_b": jnp.zeros((1, D), jnp.float32),
        "w1": jax.random.normal(keys[5], (D, d_ff), jnp.float32) * s,
        "b1": jax.random.normal(keys[6], (1, d_ff), jnp.float32) * s,
        "w2": jax.random.normal(keys[7], (d_ff, D), jnp.float32) * s,
        "b2": jnp.zeros((1, D), jnp.float32),
    }


if __name__ == "__main__":
    B, S, D, H, d_ff = 2, 8, 32, 4, 64
    key = jax.random.PRNGKey(0)
    kx, kp = jax.random.split(key)
    x = jax.random.normal(kx, (B, S, D), jnp.float32)

    # per-batch valid lengths -> mask [B, 1, S] (1.0 = attend, 0.0 = padded)
    lengths = jnp.array([S, 5], jnp.int32)
    mask = (jnp.arange(S)[None, :] < lengths[:, None]).astype(jnp.float32)[:, None, :]

    params = init_params(kp, D, d_ff)

    out = encoder_layer(x, mask, params, num_heads=H)
    out = jax.block_until_ready(out)

    ref = reference(x, mask, params, num_heads=H)
    np.testing.assert_allclose(np.asarray(out), np.asarray(ref), rtol=2e-2, atol=2e-2)

    print("KERNEL_OK")
</pallas_src>

<mosaic_0001>
module attributes {stable_mosaic.version = 11 : i64} {
  func.func @encoder_layer_kernel(%arg0: i32, %arg1: i32, %arg2: memref<1x8x32xf32, #tpu.memory_space<vmem>>, %arg3: memref<1x1x8xf32, #tpu.memory_space<vmem>>, %arg4: memref<1x32xf32, #tpu.memory_space<vmem>>, %arg5: memref<1x32xf32, #tpu.memory_space<vmem>>, %arg6: memref<32x32xbf16, #tpu.memory_space<vmem>>, %arg7: memref<1x32xf32, #tpu.memory_space<vmem>>, %arg8: memref<32x32xbf16, #tpu.memory_space<vmem>>, %arg9: memref<1x32xf32, #tpu.memory_space<vmem>>, %arg10: memref<32x32xbf16, #tpu.memory_space<vmem>>, %arg11: memref<1x32xf32, #tpu.memory_space<vmem>>, %arg12: memref<32x32xbf16, #tpu.memory_space<vmem>>, %arg13: memref<1x32xf32, #tpu.memory_space<vmem>>, %arg14: memref<1x32xf32, #tpu.memory_space<vmem>>, %arg15: memref<1x32xf32, #tpu.memory_space<vmem>>, %arg16: memref<32x64xbf16, #tpu.memory_space<vmem>>, %arg17: memref<1x64xf32, #tpu.memory_space<vmem>>, %arg18: memref<64x32xbf16, #tpu.memory_space<vmem>>, %arg19: memref<1x32xf32, #tpu.memory_space<vmem>>, %arg20: memref<1x8x32xf32, #tpu.memory_space<vmem>>, %arg21: memref<8x32xbf16, #tpu.memory_space<vmem>>, %arg22: memref<8x32xbf16, #tpu.memory_space<vmem>>) attributes {dimension_semantics = [#tpu.dimension_semantics<parallel>, #tpu.dimension_semantics<arbitrary>], iteration_bounds = array<i64: 2, 1>, scalar_prefetch = 0 : i64, scratch_operands = 2 : i64, tpu.core_type = #tpu.core_type<tc>, window_params = [{transform_indices = @transform_0, window_bounds = array<i64: 1, 8, 32>}, {transform_indices = @transform_1, window_bounds = array<i64: 1, 1, 8>}, {pipeline_mode = #tpu.pipeline_mode<synchronous>, transform_indices = @transform_2, window_bounds = array<i64: 1, 32>}, {pipeline_mode = #tpu.pipeline_mode<synchronous>, transform_indices = @transform_3, window_bounds = array<i64: 1, 32>}, {pipeline_mode = #tpu.pipeline_mode<synchronous>, transform_indices = @transform_4, window_bounds = array<i64: 32, 32>}, {pipeline_mode = #tpu.pipeline_mode<synchronous>, transform_indices = @transform_5, window_bounds = array<i64: 1, 32>}, {pipeline_mode = #tpu.pipeline_mode<synchronous>, transform_indices = @transform_6, window_bounds = array<i64: 32, 32>}, {pipeline_mode = #tpu.pipeline_mode<synchronous>, transform_indices = @transform_7, window_bounds = array<i64: 1, 32>}, {pipeline_mode = #tpu.pipeline_mode<synchronous>, transform_indices = @transform_8, window_bounds = array<i64: 32, 32>}, {pipeline_mode = #tpu.pipeline_mode<synchronous>, transform_indices = @transform_9, window_bounds = array<i64: 1, 32>}, {pipeline_mode = #tpu.pipeline_mode<synchronous>, transform_indices = @transform_10, window_bounds = array<i64: 32, 32>}, {pipeline_mode = #tpu.pipeline_mode<synchronous>, transform_indices = @transform_11, window_bounds = array<i64: 1, 32>}, {pipeline_mode = #tpu.pipeline_mode<synchronous>, transform_indices = @transform_12, window_bounds = array<i64: 1, 32>}, {pipeline_mode = #tpu.pipeline_mode<synchronous>, transform_indices = @transform_13, window_bounds = array<i64: 1, 32>}, {pipeline_mode = #tpu.pipeline_mode<synchronous>, transform_indices = @transform_14, window_bounds = array<i64: 32, 64>}, {pipeline_mode = #tpu.pipeline_mode<synchronous>, transform_indices = @transform_15, window_bounds = array<i64: 1, 64>}, {pipeline_mode = #tpu.pipeline_mode<synchronous>, transform_indices = @transform_16, window_bounds = array<i64: 64, 32>}, {pipeline_mode = #tpu.pipeline_mode<synchronous>, transform_indices = @transform_17, window_bounds = array<i64: 1, 32>}, {transform_indices = @transform_18, window_bounds = array<i64: 1, 8, 32>}]} {
    %c0 = arith.constant 0 : index
    %c0_0 = arith.constant 0 : index
    %0 = vector.load %arg4[%c0, %c0_0] : memref<1x32xf32, #tpu.memory_space<vmem>>, vector<1x32xf32>
    %c0_1 = arith.constant 0 : index
    %c0_2 = arith.constant 0 : index
    %1 = vector.load %arg5[%c0_1, %c0_2] : memref<1x32xf32, #tpu.memory_space<vmem>>, vector<1x32xf32>
    %c0_i32 = arith.constant 0 : i32
    %2 = arith.cmpi eq, %arg1, %c0_i32 : i32
    %3 = arith.extui %2 : i1 to i32
    %c0_i32_3 = arith.constant 0 : i32
    %4 = arith.cmpi ne, %3, %c0_i32_3 : i32
    scf.if %4 {
      %c0_74 = arith.constant 0 : index
      %c0_75 = arith.constant 0 : index
      %c0_76 = arith.constant 0 : index
      %178 = vector.load %arg2[%c0_74, %c0_75, %c0_76] : memref<1x8x32xf32, #tpu.memory_space<vmem>>, vector<1x8x32xf32>
      %179 = vector.shape_cast %178 : vector<1x8x32xf32> to vector<8x32xf32>
      %cst_77 = arith.constant dense<0.000000e+00> : vector<8xf32>
      %180 = vector.multi_reduction <add>, %179, %cst_77 [1] : vector<8x32xf32> to vector<8xf32>
      %181 = vector.shape_cast %180 : vector<8xf32> to vector<8x1xf32>
      %cst_78 = arith.constant 3.200000e+01 : f32
      %182 = vector.broadcast %cst_78 : f32 to vector<8x1xf32>
      %183 = arith.divf %181, %182 : vector<8x1xf32>
      %184 = vector.broadcast %183 : vector<8x1xf32> to vector<8x32xf32>
      %185 = arith.subf %179, %184 : vector<8x32xf32>
      %186 = arith.mulf %185, %185 : vector<8x32xf32>
      %cst_79 = arith.constant dense<0.000000e+00> : vector<8xf32>
      %187 = vector.multi_reduction <add>, %186, %cst_79 [1] : vector<8x32xf32> to vector<8xf32>
      %188 = vector.shape_cast %187 : vector<8xf32> to vector<8x1xf32>
      %cst_80 = arith.constant 0.0322580636 : f32
      %189 = vector.broadcast %cst_80 : f32 to vector<8x1xf32>
      %190 = arith.mulf %188, %189 : vector<8x1xf32>
      %191 = math.sqrt %190 : vector<8x1xf32>
      %cst_81 = arith.constant 9.99999997E-7 : f32
      %192 = vector.broadcast %cst_81 : f32 to vector<8x1xf32>
      %193 = arith.addf %191, %192 : vector<8x1xf32>
      %194 = tpu.reciprocal %193 {approx = true} : vector<8x1xf32> -> vector<8x1xf32>
      %195 = vector.broadcast %194 : vector<8x1xf32> to vector<8x32xf32>
      %196 = arith.mulf %185, %195 : vector<8x32xf32>
      %197 = vector.broadcast %0 : vector<1x32xf32> to vector<8x32xf32>
      %198 = arith.mulf %196, %197 : vector<8x32xf32>
      %199 = vector.broadcast %1 : vector<1x32xf32> to vector<8x32xf32>
      %200 = arith.addf %198, %199 : vector<8x32xf32>
      %201 = arith.truncf %200 : vector<8x32xf32> to vector<8x32xbf16>
      %c0_82 = arith.constant 0 : index
      %c0_83 = arith.constant 0 : index
      %202 = vector.load %arg8[%c0_82, %c0_83] : memref<32x32xbf16, #tpu.memory_space<vmem>>, vector<32x32xbf16>
      %cst_84 = arith.constant dense<0.000000e+00> : vector<8x32xf32>
      %203 = tpu.matmul %201, %202, %cst_84 {dimension_numbers = #tpu.dot_dimension_numbers<[1], [0], [0], [1], [0, 0, 1, 1], [], []>} : vector<8x32xbf16>, vector<32x32xbf16>, vector<8x32xf32> -> vector<8x32xf32>
      %c0_85 = arith.constant 0 : index
      %c0_86 = arith.constant 0 : index
      %204 = vector.load %arg9[%c0_85, %c0_86] : memref<1x32xf32, #tpu.memory_space<vmem>>, vector<1x32xf32>
      %205 = vector.broadcast %204 : vector<1x32xf32> to vector<8x32xf32>
      %206 = arith.addf %203, %205 : vector<8x32xf32>
      %c0_87 = arith.constant 0 : index
      %c0_88 = arith.constant 0 : index
      %207 = vector.load %arg10[%c0_87, %c0_88] : memref<32x32xbf16, #tpu.memory_space<vmem>>, vector<32x32xbf16>
      %cst_89 = arith.constant dense<0.000000e+00> : vector<8x32xf32>
      %208 = tpu.matmul %201, %207, %cst_89 {dimension_numbers = #tpu.dot_dimension_numbers<[1], [0], [0], [1], [0, 0, 1, 1], [], []>} : vector<8x32xbf16>, vector<32x32xbf16>, vector<8x32xf32> -> vector<8x32xf32>
      %c0_90 = arith.constant 0 : index
      %c0_91 = arith.constant 0 : index
      %209 = vector.load %arg11[%c0_90, %c0_91] : memref<1x32xf32, #tpu.memory_space<vmem>>, vector<1x32xf32>
      %210 = vector.broadcast %209 : vector<1x32xf32> to vector<8x32xf32>
      %211 = arith.addf %208, %210 : vector<8x32xf32>
      %212 = arith.truncf %206 : vector<8x32xf32> to vector<8x32xbf16>
      %c0_92 = arith.constant 0 : index
      %c0_93 = arith.constant 0 : index
      %213 = vector.load %arg21[%c0_92, %c0_93] : memref<8x32xbf16, #tpu.memory_space<vmem>>, vector<8x32xbf16>
      tpu.vector_store %arg21[%c0_92, %c0_93], %212 {strides = array<i32>} : memref<8x32xbf16, #tpu.memory_space<vmem>>, vector<8x32xbf16>,
      %214 = arith.truncf %211 : vector<8x32xf32> to vector<8x32xbf16>
      %c0_94 = arith.constant 0 : index
      %c0_95 = arith.constant 0 : index
      %215 = vector.load %arg22[%c0_94, %c0_95] : memref<8x32xbf16, #tpu.memory_space<vmem>>, vector<8x32xbf16>
      tpu.vector_store %arg22[%c0_94, %c0_95], %214 {strides = array<i32>} : memref<8x32xbf16, #tpu.memory_space<vmem>>, vector<8x32xbf16>,
    } else {
    }
    %c8_i32 = arith.constant 8 : i32
    %5 = arith.muli %arg1, %c8_i32 : i32
    %6 = tpu.assume_multiple %5, 8 : i32
    %c0_4 = arith.constant 0 : index
    %7 = arith.index_cast %6 : i32 to index
    %c0_5 = arith.constant 0 : index
    %8 = vector.load %arg2[%c0_4, %7, %c0_5] : memref<1x8x32xf32, #tpu.memory_space<vmem>>, vector<1x8x32xf32>
    %9 = vector.shape_cast %8 : vector<1x8x32xf32> to vector<8x32xf32>
    %cst = arith.constant dense<0.000000e+00> : vector<8xf32>
    %10 = vector.multi_reduction <add>, %9, %cst [1] : vector<8x32xf32> to vector<8xf32>
    %11 = vector.shape_cast %10 : vector<8xf32> to vector<8x1xf32>
    %cst_6 = arith.constant 3.200000e+01 : f32
    %12 = vector.broadcast %cst_6 : f32 to vector<8x1xf32>
    %13 = arith.divf %11, %12 : vector<8x1xf32>
    %14 = vector.broadcast %13 : vector<8x1xf32> to vector<8x32xf32>
    %15 = arith.subf %9, %14 : vector<8x32xf32>
    %16 = arith.mulf %15, %15 : vector<8x32xf32>
    %cst_7 = arith.constant dense<0.000000e+00> : vector<8xf32>
    %17 = vector.multi_reduction <add>, %16, %cst_7 [1] : vector<8x32xf32> to vector<8xf32>
    %18 = vector.shape_cast %17 : vector<8xf32> to vector<8x1xf32>
    %cst_8 = arith.constant 0.0322580636 : f32
    %19 = vector.broadcast %cst_8 : f32 to vector<8x1xf32>
    %20 = arith.mulf %18, %19 : vector<8x1xf32>
    %21 = math.sqrt %20 : vector<8x1xf32>
    %cst_9 = arith.constant 9.99999997E-7 : f32
    %22 = vector.broadcast %cst_9 : f32 to vector<8x1xf32>
    %23 = arith.addf %21, %22 : vector<8x1xf32>
    %24 = tpu.reciprocal %23 {approx = true} : vector<8x1xf32> -> vector<8x1xf32>
    %25 = vector.broadcast %24 : vector<8x1xf32> to vector<8x32xf32>
    %26 = arith.mulf %15, %25 : vector<8x32xf32>
    %27 = vector.broadcast %0 : vector<1x32xf32> to vector<8x32xf32>
    %28 = arith.mulf %26, %27 : vector<8x32xf32>
    %29 = vector.broadcast %1 : vector<1x32xf32> to vector<8x32xf32>
    %30 = arith.addf %28, %29 : vector<8x32xf32>
    %31 = arith.truncf %30 : vector<8x32xf32> to vector<8x32xbf16>
    %c0_10 = arith.constant 0 : index
    %c0_11 = arith.constant 0 : index
    %32 = vector.load %arg6[%c0_10, %c0_11] : memref<32x32xbf16, #tpu.memory_space<vmem>>, vector<32x32xbf16>
    %cst_12 = arith.constant dense<0.000000e+00> : vector<8x32xf32>
    %33 = tpu.matmul %31, %32, %cst_12 {dimension_numbers = #tpu.dot_dimension_numbers<[1], [0], [0], [1], [0, 0, 1, 1], [], []>} : vector<8x32xbf16>, vector<32x32xbf16>, vector<8x32xf32> -> vector<8x32xf32>
    %c0_13 = arith.constant 0 : index
    %c0_14 = arith.constant 0 : index
    %34 = vector.load %arg7[%c0_13, %c0_14] : memref<1x32xf32, #tpu.memory_space<vmem>>, vector<1x32xf32>
    %35 = vector.broadcast %34 : vector<1x32xf32> to vector<8x32xf32>
    %36 = arith.addf %33, %35 : vector<8x32xf32>
    %cst_15 = arith.constant 0.353553385 : f32
    %37 = vector.broadcast %cst_15 : f32 to vector<8x32xf32>
    %38 = arith.mulf %36, %37 : vector<8x32xf32>
    %39 = arith.truncf %38 : vector<8x32xf32> to vector<8x32xbf16>
    %c0_16 = arith.constant 0 : index
    %c0_17 = arith.constant 0 : index
    %c0_18 = arith.constant 0 : index
    %40 = vector.load %arg3[%c0_16, %c0_17, %c0_18] : memref<1x1x8xf32, #tpu.memory_space<vmem>>, vector<1x1x8xf32>
    %41 = vector.shape_cast %40 : vector<1x1x8xf32> to vector<1x8xf32>
    %c0_19 = arith.constant 0 : index
    %c0_20 = arith.constant 0 : index
    %42 = vector.load %arg21[%c0_19, %c0_20] : memref<8x32xbf16, #tpu.memory_space<vmem>>, vector<8x32xbf16>
    %c0_21 = arith.constant 0 : index
    %c0_22 = arith.constant 0 : index
    %43 = vector.load %arg22[%c0_21, %c0_22] : memref<8x32xbf16, #tpu.memory_space<vmem>>, vector<8x32xbf16>
    %cst_23 = arith.constant 0.000000e+00 : f32
    %44 = vector.broadcast %cst_23 : f32 to vector<8x32xf32>
    %45 = vector.extract_strided_slice %39 {offsets = [0, 0], sizes = [8, 8], strides = [1, 1]} : vector<8x32xbf16> to vector<8x8xbf16>
    %46 = vector.extract_strided_slice %42 {offsets = [0, 0], sizes = [8, 8], strides = [1, 1]} : vector<8x32xbf16> to vector<8x8xbf16>
    %cst_24 = arith.constant dense<0.000000e+00> : vector<8x8xf32>
    %47 = tpu.matmul %45, %46, %cst_24 {dimension_numbers = #tpu.dot_dimension_numbers<[1], [1], [0], [0], [0, 0, 1, 0], [], []>} : vector<8x8xbf16>, vector<8x8xbf16>, vector<8x8xf32> -> vector<8x8xf32>
    %48 = vector.broadcast %41 : vector<1x8xf32> to vector<8x8xf32>
    %49 = arith.addf %47, %48 : vector<8x8xf32>
    %cst_25 = arith.constant dense<0xFF800000> : vector<8xf32>
    %50 = vector.multi_reduction <maximumf>, %49, %cst_25 [1] : vector<8x8xf32> to vector<8xf32>
    %51 = vector.shape_cast %50 : vector<8xf32> to vector<8x1xf32>
    %52 = vector.broadcast %51 : vector<8x1xf32> to vector<8x8xf32>
    %53 = arith.subf %49, %52 : vector<8x8xf32>
    %54 = math.exp %53 : vector<8x8xf32>
    %cst_26 = arith.constant dense<0.000000e+00> : vector<8xf32>
    %55 = vector.multi_reduction <add>, %54, %cst_26 [1] : vector<8x8xf32> to vector<8xf32>
    %56 = vector.shape_cast %55 : vector<8xf32> to vector<8x1xf32>
    %57 = tpu.reciprocal %56 {approx = true} : vector<8x1xf32> -> vector<8x1xf32>
    %58 = vector.broadcast %57 : vector<8x1xf32> to vector<8x8xf32>
    %59 = arith.mulf %54, %58 : vector<8x8xf32>
    %60 = arith.truncf %59 : vector<8x8xf32> to vector<8x8xbf16>
    %61 = vector.extract_strided_slice %43 {offsets = [0, 0], sizes = [8, 8], strides = [1, 1]} : vector<8x32xbf16> to vector<8x8xbf16>
    %cst_27 = arith.constant dense<0.000000e+00> : vector<8x8xf32>
    %62 = tpu.matmul %60, %61, %cst_27 {dimension_numbers = #tpu.dot_dimension_numbers<[1], [0], [0], [1], [0, 0, 1, 1], [], []>} : vector<8x8xbf16>, vector<8x8xbf16>, vector<8x8xf32> -> vector<8x8xf32>
    %63 = arith.truncf %62 : vector<8x8xf32> to vector<8x8xbf16>
    %c0_28 = arith.constant 0 : index
    %c0_29 = arith.constant 0 : index
    %64 = vector.load %arg12[%c0_28, %c0_29] : memref<32x32xbf16, #tpu.memory_space<vmem>>, vector<8x32xbf16>
    %cst_30 = arith.constant dense<0.000000e+00> : vector<8x32xf32>
    %65 = tpu.matmul %63, %64, %cst_30 {dimension_numbers = #tpu.dot_dimension_numbers<[1], [0], [0], [1], [0, 0, 1, 1], [], []>} : vector<8x8xbf16>, vector<8x32xbf16>, vector<8x32xf32> -> vector<8x32xf32>
    %66 = arith.addf %44, %65 : vector<8x32xf32>
    %67 = vector.extract_strided_slice %39 {offsets = [0, 8], sizes = [8, 8], strides = [1, 1]} : vector<8x32xbf16> to vector<8x8xbf16>
    %68 = vector.extract_strided_slice %42 {offsets = [0, 8], sizes = [8, 8], strides = [1, 1]} : vector<8x32xbf16> to vector<8x8xbf16>
    %cst_31 = arith.constant dense<0.000000e+00> : vector<8x8xf32>
    %69 = tpu.matmul %67, %68, %cst_31 {dimension_numbers = #tpu.dot_dimension_numbers<[1], [1], [0], [0], [0, 0, 1, 0], [], []>} : vector<8x8xbf16>, vector<8x8xbf16>, vector<8x8xf32> -> vector<8x8xf32>
    %70 = vector.broadcast %41 : vector<1x8xf32> to vector<8x8xf32>
    %71 = arith.addf %69, %70 : vector<8x8xf32>
    %cst_32 = arith.constant dense<0xFF800000> : vector<8xf32>
    %72 = vector.multi_reduction <maximumf>, %71, %cst_32 [1] : vector<8x8xf32> to vector<8xf32>
    %73 = vector.shape_cast %72 : vector<8xf32> to vector<8x1xf32>
    %74 = vector.broadcast %73 : vector<8x1xf32> to vector<8x8xf32>
    %75 = arith.subf %71, %74 : vector<8x8xf32>
    %76 = math.exp %75 : vector<8x8xf32>
    %cst_33 = arith.constant dense<0.000000e+00> : vector<8xf32>
    %77 = vector.multi_reduction <add>, %76, %cst_33 [1] : vector<8x8xf32> to vector<8xf32>
    %78 = vector.shape_cast %77 : vector<8xf32> to vector<8x1xf32>
    %79 = tpu.reciprocal %78 {approx = true} : vector<8x1xf32> -> vector<8x1xf32>
    %80 = vector.broadcast %79 : vector<8x1xf32> to vector<8x8xf32>
    %81 = arith.mulf %76, %80 : vector<8x8xf32>
    %82 = arith.truncf %81 : vector<8x8xf32> to vector<8x8xbf16>
    %83 = vector.extract_strided_slice %43 {offsets = [0, 8], sizes = [8, 8], strides = [1, 1]} : vector<8x32xbf16> to vector<8x8xbf16>
    %cst_34 = arith.constant dense<0.000000e+00> : vector<8x8xf32>
    %84 = tpu.matmul %82, %83, %cst_34 {dimension_numbers = #tpu.dot_dimension_numbers<[1], [0], [0], [1], [0, 0, 1, 1], [], []>} : vector<8x8xbf16>, vector<8x8xbf16>, vector<8x8xf32> -> vector<8x8xf32>
    %85 = arith.truncf %84 : vector<8x8xf32> to vector<8x8xbf16>
    %c8 = arith.constant 8 : index
    %c0_35 = arith.constant 0 : index
    %86 = vector.load %arg12[%c8, %c0_35] : memref<32x32xbf16, #tpu.memory_space<vmem>>, vector<8x32xbf16>
    %cst_36 = arith.constant dense<0.000000e+00> : vector<8x32xf32>
    %87 = tpu.matmul %85, %86, %cst_36 {dimension_numbers = #tpu.dot_dimension_numbers<[1], [0], [0], [1], [0, 0, 1, 1], [], []>} : vector<8x8xbf16>, vector<8x32xbf16>, vector<8x32xf32> -> vector<8x32xf32>
    %88 = arith.addf %66, %87 : vector<8x32xf32>
    %89 = vector.extract_strided_slice %39 {offsets = [0, 16], sizes = [8, 8], strides = [1, 1]} : vector<8x32xbf16> to vector<8x8xbf16>
    %90 = vector.extract_strided_slice %42 {offsets = [0, 16], sizes = [8, 8], strides = [1, 1]} : vector<8x32xbf16> to vector<8x8xbf16>
    %cst_37 = arith.constant dense<0.000000e+00> : vector<8x8xf32>
    %91 = tpu.matmul %89, %90, %cst_37 {dimension_numbers = #tpu.dot_dimension_numbers<[1], [1], [0], [0], [0, 0, 1, 0], [], []>} : vector<8x8xbf16>, vector<8x8xbf16>, vector<8x8xf32> -> vector<8x8xf32>
    %92 = vector.broadcast %41 : vector<1x8xf32> to vector<8x8xf32>
    %93 = arith.addf %91, %92 : vector<8x8xf32>
    %cst_38 = arith.constant dense<0xFF800000> : vector<8xf32>
    %94 = vector.multi_reduction <maximumf>, %93, %cst_38 [1] : vector<8x8xf32> to vector<8xf32>
    %95 = vector.shape_cast %94 : vector<8xf32> to vector<8x1xf32>
    %96 = vector.broadcast %95 : vector<8x1xf32> to vector<8x8xf32>
    %97 = arith.subf %93, %96 : vector<8x8xf32>
    %98 = math.exp %97 : vector<8x8xf32>
    %cst_39 = arith.constant dense<0.000000e+00> : vector<8xf32>
    %99 = vector.multi_reduction <add>, %98, %cst_39 [1] : vector<8x8xf32> to vector<8xf32>
    %100 = vector.shape_cast %99 : vector<8xf32> to vector<8x1xf32>
    %101 = tpu.reciprocal %100 {approx = true} : vector<8x1xf32> -> vector<8x1xf32>
    %102 = vector.broadcast %101 : vector<8x1xf32> to vector<8x8xf32>
    %103 = arith.mulf %98, %102 : vector<8x8xf32>
    %104 = arith.truncf %103 : vector<8x8xf32> to vector<8x8xbf16>
    %105 = vector.extract_strided_slice %43 {offsets = [0, 16], sizes = [8, 8], strides = [1, 1]} : vector<8x32xbf16> to vector<8x8xbf16>
    %cst_40 = arith.constant dense<0.000000e+00> : vector<8x8xf32>
    %106 = tpu.matmul %104, %105, %cst_40 {dimension_numbers = #tpu.dot_dimension_numbers<[1], [0], [0], [1], [0, 0, 1, 1], [], []>} : vector<8x8xbf16>, vector<8x8xbf16>, vector<8x8xf32> -> vector<8x8xf32>
    %107 = arith.truncf %106 : vector<8x8xf32> to vector<8x8xbf16>
    %c16 = arith.constant 16 : index
    %c0_41 = arith.constant 0 : index
    %108 = vector.load %arg12[%c16, %c0_41] : memref<32x32xbf16, #tpu.memory_space<vmem>>, vector<8x32xbf16>
    %cst_42 = arith.constant dense<0.000000e+00> : vector<8x32xf32>
    %109 = tpu.matmul %107, %108, %cst_42 {dimension_numbers = #tpu.dot_dimension_numbers<[1], [0], [0], [1], [0, 0, 1, 1], [], []>} : vector<8x8xbf16>, vector<8x32xbf16>, vector<8x32xf32> -> vector<8x32xf32>
    %110 = arith.addf %88, %109 : vector<8x32xf32>
    %111 = vector.extract_strided_slice %39 {offsets = [0, 24], sizes = [8, 8], strides = [1, 1]} : vector<8x32xbf16> to vector<8x8xbf16>
    %112 = vector.extract_strided_slice %42 {offsets = [0, 24], sizes = [8, 8], strides = [1, 1]} : vector<8x32xbf16> to vector<8x8xbf16>
    %cst_43 = arith.constant dense<0.000000e+00> : vector<8x8xf32>
    %113 = tpu.matmul %111, %112, %cst_43 {dimension_numbers = #tpu.dot_dimension_numbers<[1], [1], [0], [0], [0, 0, 1, 0], [], []>} : vector<8x8xbf16>, vector<8x8xbf16>, vector<8x8xf32> -> vector<8x8xf32>
    %114 = vector.broadcast %41 : vector<1x8xf32> to vector<8x8xf32>
    %115 = arith.addf %113, %114 : vector<8x8xf32>
    %cst_44 = arith.constant dense<0xFF800000> : vector<8xf32>
    %116 = vector.multi_reduction <maximumf>, %115, %cst_44 [1] : vector<8x8xf32> to vector<8xf32>
    %117 = vector.shape_cast %116 : vector<8xf32> to vector<8x1xf32>
    %118 = vector.broadcast %117 : vector<8x1xf32> to vector<8x8xf32>
    %119 = arith.subf %115, %118 : vector<8x8xf32>
    %120 = math.exp %119 : vector<8x8xf32>
    %cst_45 = arith.constant dense<0.000000e+00> : vector<8xf32>
    %121 = vector.multi_reduction <add>, %120, %cst_45 [1] : vector<8x8xf32> to vector<8xf32>
    %122 = vector.shape_cast %121 : vector<8xf32> to vector<8x1xf32>
    %123 = tpu.reciprocal %122 {approx = true} : vector<8x1xf32> -> vector<8x1xf32>
    %124 = vector.broadcast %123 : vector<8x1xf32> to vector<8x8xf32>
    %125 = arith.mulf %120, %124 : vector<8x8xf32>
    %126 = arith.truncf %125 : vector<8x8xf32> to vector<8x8xbf16>
    %127 = vector.extract_strided_slice %43 {offsets = [0, 24], sizes = [8, 8], strides = [1, 1]} : vector<8x32xbf16> to vector<8x8xbf16>
    %cst_46 = arith.constant dense<0.000000e+00> : vector<8x8xf32>
    %128 = tpu.matmul %126, %127, %cst_46 {dimension_numbers = #tpu.dot_dimension_numbers<[1], [0], [0], [1], [0, 0, 1, 1], [], []>} : vector<8x8xbf16>, vector<8x8xbf16>, vector<8x8xf32> -> vector<8x8xf32>
    %129 = arith.truncf %128 : vector<8x8xf32> to vector<8x8xbf16>
    %c24 = arith.constant 24 : index
    %c0_47 = arith.constant 0 : index
    %130 = vector.load %arg12[%c24, %c0_47] : memref<32x32xbf16, #tpu.memory_space<vmem>>, vector<8x32xbf16>
    %cst_48 = arith.constant dense<0.000000e+00> : vector<8x32xf32>
    %131 = tpu.matmul %129, %130, %cst_48 {dimension_numbers = #tpu.dot_dimension_numbers<[1], [0], [0], [1], [0, 0, 1, 1], [], []>} : vector<8x8xbf16>, vector<8x32xbf16>, vector<8x32xf32> -> vector<8x32xf32>
    %132 = arith.addf %110, %131 : vector<8x32xf32>
    %133 = arith.addf %9, %132 : vector<8x32xf32>
    %c0_49 = arith.constant 0 : index
    %c0_50 = arith.constant 0 : index
    %134 = vector.load %arg13[%c0_49, %c0_50] : memref<1x32xf32, #tpu.memory_space<vmem>>, vector<1x32xf32>
    %135 = vector.broadcast %134 : vector<1x32xf32> to vector<8x32xf32>
    %136 = arith.addf %133, %135 : vector<8x32xf32>
    %c0_51 = arith.constant 0 : index
    %c0_52 = arith.constant 0 : index
    %137 = vector.load %arg14[%c0_51, %c0_52] : memref<1x32xf32, #tpu.memory_space<vmem>>, vector<1x32xf32>
    %c0_53 = arith.constant 0 : index
    %c0_54 = arith.constant 0 : index
    %138 = vector.load %arg15[%c0_53, %c0_54] : memref<1x32xf32, #tpu.memory_space<vmem>>, vector<1x32xf32>
    %cst_55 = arith.constant dense<0.000000e+00> : vector<8xf32>
    %139 = vector.multi_reduction <add>, %136, %cst_55 [1] : vector<8x32xf32> to vector<8xf32>
    %140 = vector.shape_cast %139 : vector<8xf32> to vector<8x1xf32>
    %cst_56 = arith.constant 3.200000e+01 : f32
    %141 = vector.broadcast %cst_56 : f32 to vector<8x1xf32>
    %142 = arith.divf %140, %141 : vector<8x1xf32>
    %143 = vector.broadcast %142 : vector<8x1xf32> to vector<8x32xf32>
    %144 = arith.subf %136, %143 : vector<8x32xf32>
    %145 = arith.mulf %144, %144 : vector<8x32xf32>
    %cst_57 = arith.constant dense<0.000000e+00> : vector<8xf32>
    %146 = vector.multi_reduction <add>, %145, %cst_57 [1] : vector<8x32xf32> to vector<8xf32>
    %147 = vector.shape_cast %146 : vector<8xf32> to vector<8x1xf32>
    %cst_58 = arith.constant 0.0322580636 : f32
    %148 = vector.broadcast %cst_58 : f32 to vector<8x1xf32>
    %149 = arith.mulf %147, %148 : vector<8x1xf32>
    %150 = math.sqrt %149 : vector<8x1xf32>
    %cst_59 = arith.constant 9.99999997E-7 : f32
    %151 = vector.broadcast %cst_59 : f32 to vector<8x1xf32>
    %152 = arith.addf %150, %151 : vector<8x1xf32>
    %153 = tpu.reciprocal %152 {approx = true} : vector<8x1xf32> -> vector<8x1xf32>
    %154 = vector.broadcast %153 : vector<8x1xf32> to vector<8x32xf32>
    %155 = arith.mulf %144, %154 : vector<8x32xf32>
    %156 = vector.broadcast %137 : vector<1x32xf32> to vector<8x32xf32>
    %157 = arith.mulf %155, %156 : vector<8x32xf32>
    %158 = vector.broadcast %138 : vector<1x32xf32> to vector<8x32xf32>
    %159 = arith.addf %157, %158 : vector<8x32xf32>
    %160 = arith.truncf %159 : vector<8x32xf32> to vector<8x32xbf16>
    %c0_60 = arith.constant 0 : index
    %c0_61 = arith.constant 0 : index
    %161 = vector.load %arg16[%c0_60, %c0_61] : memref<32x64xbf16, #tpu.memory_space<vmem>>, vector<32x64xbf16>
    %cst_62 = arith.constant dense<0.000000e+00> : vector<8x64xf32>
    %162 = tpu.matmul %160, %161, %cst_62 {dimension_numbers = #tpu.dot_dimension_numbers<[1], [0], [0], [1], [0, 0, 1, 1], [], []>} : vector<8x32xbf16>, vector<32x64xbf16>, vector<8x64xf32> -> vector<8x64xf32>
    %c0_63 = arith.constant 0 : index
    %c0_64 = arith.constant 0 : index
    %163 = vector.load %arg17[%c0_63, %c0_64] : memref<1x64xf32, #tpu.memory_space<vmem>>, vector<1x64xf32>
    %164 = vector.broadcast %163 : vector<1x64xf32> to vector<8x64xf32>
    %165 = arith.addf %162, %164 : vector<8x64xf32>
    %cst_65 = arith.constant 0.000000e+00 : f32
    %166 = vector.broadcast %cst_65 : f32 to vector<8x64xf32>
    %167 = arith.maximumf %165, %166 : vector<8x64xf32>
    %168 = arith.truncf %167 : vector<8x64xf32> to vector<8x64xbf16>
    %c0_66 = arith.constant 0 : index
    %c0_67 = arith.constant 0 : index
    %169 = vector.load %arg18[%c0_66, %c0_67] : memref<64x32xbf16, #tpu.memory_space<vmem>>, vector<64x32xbf16>
    %cst_68 = arith.constant dense<0.000000e+00> : vector<8x32xf32>
    %170 = tpu.matmul %168, %169, %cst_68 {dimension_numbers = #tpu.dot_dimension_numbers<[1], [0], [0], [1], [0, 0, 1, 1], [], []>} : vector<8x64xbf16>, vector<64x32xbf16>, vector<8x32xf32> -> vector<8x32xf32>
    %c0_69 = arith.constant 0 : index
    %c0_70 = arith.constant 0 : index
    %171 = vector.load %arg19[%c0_69, %c0_70] : memref<1x32xf32, #tpu.memory_space<vmem>>, vector<1x32xf32>
    %172 = vector.broadcast %171 : vector<1x32xf32> to vector<8x32xf32>
    %173 = arith.addf %170, %172 : vector<8x32xf32>
    %174 = arith.addf %136, %173 : vector<8x32xf32>
    %c0_71 = arith.constant 0 : index
    %c0_72 = arith.constant 0 : index
    %c0_73 = arith.constant 0 : index
    %175 = vector.load %arg20[%c0_71, %c0_72, %c0_73] : memref<1x8x32xf32, #tpu.memory_space<vmem>>, vector<1x8x32xf32>
    %176 = vector.shape_cast %175 : vector<1x8x32xf32> to vector<8x32xf32>
    %177 = vector.shape_cast %174 : vector<8x32xf32> to vector<1x8x32xf32>
    tpu.vector_store %arg20[%c0_71, %c0_72, %c0_73], %177 {strides = array<i32>} : memref<1x8x32xf32, #tpu.memory_space<vmem>>, vector<1x8x32xf32>,
    return
  }
  func.func @transform_0(%arg0: i32, %arg1: i32) -> (i32, i32, i32) {
    %c0_i32 = arith.constant 0 : i32
    %c0_i32_0 = arith.constant 0 : i32
    %c0_i32_1 = arith.constant 0 : i32
    return %arg0, %c0_i32, %c0_i32_0 : i32, i32, i32
  }
  func.func @transform_1(%arg0: i32, %arg1: i32) -> (i32, i32, i32) {
    %c0_i32 = arith.constant 0 : i32
    %c0_i32_0 = arith.constant 0 : i32
    %c0_i32_1 = arith.constant 0 : i32
    return %arg0, %c0_i32, %c0_i32_0 : i32, i32, i32
  }
  func.func @transform_2(%arg0: i32, %arg1: i32) -> (i32, i32) {
    %c0_i32 = arith.constant 0 : i32
    %c0_i32_0 = arith.constant 0 : i32
    %c0_i32_1 = arith.constant 0 : i32
    return %c0_i32, %c0_i32_0 : i32, i32
  }
  func.func @transform_3(%arg0: i32, %arg1: i32) -> (i32, i32) {
    %c0_i32 = arith.constant 0 : i32
    %c0_i32_0 = arith.constant 0 : i32
    %c0_i32_1 = arith.constant 0 : i32
    return %c0_i32, %c0_i32_0 : i32, i32
  }
  func.func @transform_4(%arg0: i32, %arg1: i32) -> (i32, i32) {
    %c0_i32 = arith.constant 0 : i32
    %c0_i32_0 = arith.constant 0 : i32
    %c0_i32_1 = arith.constant 0 : i32
    return %c0_i32, %c0_i32_0 : i32, i32
  }
  func.func @transform_5(%arg0: i32, %arg1: i32) -> (i32, i32) {
    %c0_i32 = arith.constant 0 : i32
    %c0_i32_0 = arith.constant 0 : i32
    %c0_i32_1 = arith.constant 0 : i32
    return %c0_i32, %c0_i32_0 : i32, i32
  }
  func.func @transform_6(%arg0: i32, %arg1: i32) -> (i32, i32) {
    %c0_i32 = arith.constant 0 : i32
    %c0_i32_0 = arith.constant 0 : i32
    %c0_i32_1 = arith.constant 0 : i32
    return %c0_i32, %c0_i32_0 : i32, i32
  }
  func.func @transform_7(%arg0: i32, %arg1: i32) -> (i32, i32) {
    %c0_i32 = arith.constant 0 : i32
    %c0_i32_0 = arith.constant 0 : i32
    %c0_i32_1 = arith.constant 0 : i32
    return %c0_i32, %c0_i32_0 : i32, i32
  }
  func.func @transform_8(%arg0: i32, %arg1: i32) -> (i32, i32) {
    %c0_i32 = arith.constant 0 : i32
    %c0_i32_0 = arith.constant 0 : i32
    %c0_i32_1 = arith.constant 0 : i32
    return %c0_i32, %c0_i32_0 : i32, i32
  }
  func.func @transform_9(%arg0: i32, %arg1: i32) -> (i32, i32) {
    %c0_i32 = arith.constant 0 : i32
    %c0_i32_0 = arith.constant 0 : i32
    %c0_i32_1 = arith.constant 0 : i32
    return %c0_i32, %c0_i32_0 : i32, i32
  }
  func.func @transform_10(%arg0: i32, %arg1: i32) -> (i32, i32) {
    %c0_i32 = arith.constant 0 : i32
    %c0_i32_0 = arith.constant 0 : i32
    %c0_i32_1 = arith.constant 0 : i32
    return %c0_i32, %c0_i32_0 : i32, i32
  }
  func.func @transform_11(%arg0: i32, %arg1: i32) -> (i32, i32) {
    %c0_i32 = arith.constant 0 : i32
    %c0_i32_0 = arith.constant 0 : i32
    %c0_i32_1 = arith.constant 0 : i32
    return %c0_i32, %c0_i32_0 : i32, i32
  }
  func.func @transform_12(%arg0: i32, %arg1: i32) -> (i32, i32) {
    %c0_i32 = arith.constant 0 : i32
    %c0_i32_0 = arith.constant 0 : i32
    %c0_i32_1 = arith.constant 0 : i32
    return %c0_i32, %c0_i32_0 : i32, i32
  }
  func.func @transform_13(%arg0: i32, %arg1: i32) -> (i32, i32) {
    %c0_i32 = arith.constant 0 : i32
    %c0_i32_0 = arith.constant 0 : i32
    %c0_i32_1 = arith.constant 0 : i32
    return %c0_i32, %c0_i32_0 : i32, i32
  }
  func.func @transform_14(%arg0: i32, %arg1: i32) -> (i32, i32) {
    %c0_i32 = arith.constant 0 : i32
    %c0_i32_0 = arith.constant 0 : i32
    %c0_i32_1 = arith.constant 0 : i32
    return %c0_i32, %c0_i32_0 : i32, i32
  }
  func.func @transform_15(%arg0: i32, %arg1: i32) -> (i32, i32) {
    %c0_i32 = arith.constant 0 : i32
    %c0_i32_0 = arith.constant 0 : i32
    %c0_i32_1 = arith.constant 0 : i32
    return %c0_i32, %c0_i32_0 : i32, i32
  }
  func.func @transform_16(%arg0: i32, %arg1: i32) -> (i32, i32) {
    %c0_i32 = arith.constant 0 : i32
    %c0_i32_0 = arith.constant 0 : i32
    %c0_i32_1 = arith.constant 0 : i32
    return %c0_i32, %c0_i32_0 : i32, i32
  }
  func.func @transform_17(%arg0: i32, %arg1: i32) -> (i32, i32) {
    %c0_i32 = arith.constant 0 : i32
    %c0_i32_0 = arith.constant 0 : i32
    %c0_i32_1 = arith.constant 0 : i32
    return %c0_i32, %c0_i32_0 : i32, i32
  }
  func.func @transform_18(%arg0: i32, %arg1: i32) -> (i32, i32, i32) {
    %c0_i32 = arith.constant 0 : i32
    %c0_i32_0 = arith.constant 0 : i32
    return %arg0, %arg1, %c0_i32 : i32, i32, i32
  }
}

</mosaic_0001>

<llo_original>
// kernel: tpu_custom_call.1
$region0: #{tpu_custom_call.1}
  #allocation0 [shape = 'u32[]', space=smem, size = 0x4, offset = 0x4, fixed_abs, tag = 'smem constant byte address 0x4 - core index']
  #allocation1 [shape = 'u32[144,128]{1,0:T(1,128)}', space=vmem, size = 0x12000, scoped, tag = 'internal scratch']
  #allocation2 [shape = 'bf16[8,32]{1,0:T(8,128)(2,1)}', space=vmem, size = 0x800, scoped, tag = 'scratch operand']
  #allocation3 [shape = 'bf16[8,32]{1,0:T(8,128)(2,1)}', space=vmem, size = 0x800, scoped, tag = 'scratch operand']
  %s0 = inlined_call_operand.vmem [shape: f32[2,8,32], index: 0, kind: input, shape index: {}]
  %s1 = inlined_call_operand.hbm [shape: f32[2,1,8], index: 1, kind: input, shape index: {}]
  %s2 = inlined_call_operand.vmem [shape: f32[1,32], index: 2, kind: input, shape index: {}]
  %s3 = inlined_call_operand.hbm [shape: f32[1,32], index: 3, kind: input, shape index: {}]
  %s4 = inlined_call_operand.vmem [shape: bf16[32,32], index: 4, kind: input, shape index: {}]
  %s5 = inlined_call_operand.hbm [shape: f32[1,32], index: 5, kind: input, shape index: {}]
  %s6 = inlined_call_operand.vmem [shape: bf16[32,32], index: 6, kind: input, shape index: {}]
  %s7 = inlined_call_operand.hbm [shape: f32[1,32], index: 7, kind: input, shape index: {}]
  %s8 = inlined_call_operand.hbm [shape: bf16[32,32], index: 8, kind: input, shape index: {}]
  %s9 = inlined_call_operand.hbm [shape: f32[1,32], index: 9, kind: input, shape index: {}]
  %s10 = inlined_call_operand.vmem [shape: bf16[32,32], index: 10, kind: input, shape index: {}]
  %s11 = inlined_call_operand.hbm [shape: f32[1,32], index: 11, kind: input, shape index: {}]
  %s12 = inlined_call_operand.hbm [shape: f32[1,32], index: 12, kind: input, shape index: {}]
  %s13 = inlined_call_operand.hbm [shape: f32[1,32], index: 13, kind: input, shape index: {}]
  %s14 = inlined_call_operand.vmem [shape: bf16[32,64], index: 14, kind: input, shape index: {}]
  %s15 = inlined_call_operand.vmem [shape: f32[1,64], index: 15, kind: input, shape index: {}]
  %s16 = inlined_call_operand.vmem [shape: bf16[64,32], index: 16, kind: input, shape index: {}]
  %s17 = inlined_call_operand.vmem [shape: f32[1,32], index: 17, kind: input, shape index: {}]
  %s18 = inlined_call_operand.hbm [shape: f32[2,8,32], index: 18, kind: output, shape index: {}]
  %s19 = sld [smem:[#allocation0]]
  $region145: #{tpu_custom_call.1} parent=0
    _
  %s21 = ssub.s32 1, %s19
  %s22 = scalar_select 0, %s21, %s19
  $region1: #{tpu_custom_call.1} parent=0
    #allocation4 [shape = 'u8[1024]{0}', space=vmem, size = 0x400, scoped, tag = 'input window, operand 1']
    #allocation5 [shape = 's32[2]{0}', space=sflag, size = 0x8, scoped, tag = 'scoped memory for tpu_custom_call.1']
    #allocation6 [shape = 's32[2]{0}', space=sflag, size = 0x8, scoped, tag = 'scoped memory for tpu_custom_call.1']
    #allocation7 [shape = 'u8[512]{0}', space=vmem, size = 0x400, scoped, tag = 'input window, operand 3, single buffered']
    #allocation8 [shape = 's32[1]{0}', space=sflag, size = 0x4, scoped, tag = 'scoped memory for tpu_custom_call.1']
    #allocation9 [shape = 'u8[512]{0}', space=vmem, size = 0x400, scoped, tag = 'input window, operand 5, single buffered']
    #allocation10 [shape = 'u8[512]{0}', space=vmem, size = 0x400, scoped, tag = 'input window, operand 7, single buffered']
    #allocation11 [shape = 's32[1]{0}', space=sflag, size = 0x4, scoped, tag = 'scoped memory for tpu_custom_call.1']
    #allocation12 [shape = 'u8[8192]{0}', space=vmem, size = 0x2000, scoped, tag = 'input window, operand 8, single buffered']
    #allocation13 [shape = 'u8[512]{0}', space=vmem, size = 0x400, scoped, tag = 'input window, operand 9, single buffered']
    #allocation14 [shape = 's32[1]{0}', space=sflag, size = 0x4, scoped, tag = 'scoped memory for tpu_custom_call.1']
    #allocation15 [shape = 'u8[512]{0}', space=vmem, size = 0x400, scoped, tag = 'input window, operand 11, single buffered']
    #allocation16 [shape = 'u8[512]{0}', space=vmem, size = 0x400, scoped, tag = 'input window, operand 12, single buffered']
    #allocation17 [shape = 's32[1]{0}', space=sflag, size = 0x4, scoped, tag = 'scoped memory for tpu_custom_call.1']
    #allocation18 [shape = 'u8[512]{0}', space=vmem, size = 0x400, scoped, tag = 'input window, operand 13, single buffered']
    #allocation19 [shape = 'u8[8192]{0}', space=vmem, size = 0x2000, scoped, tag = 'output window, operand 0']
    %23 = vsyncpa [#allocation5], 0
    %s24 = scalar_lea.sflag [#allocation5], 1
    %25 = vsyncpa %s24, 0
    %26 = vsyncpa [#allocation8], 0
    %27 = vsyncpa [#allocation11], 0
    %28 = vsyncpa [#allocation14], 0
    %29 = vsyncpa [#allocation17], 0
    %30 = vsyncpa [#allocation6], 0
    %s31 = scalar_lea.sflag [#allocation6], 1
    %32 = vsyncpa %s31, 0
    loop: start=0, step=1, limit=4
    $region2: #{tpu_custom_call.1} parent=1 // loop_pre_header
      _
    $region3: #{tpu_custom_call.1} parent=1 // loop_header
      %s34 = sphi 0, %s38
      %p35 = scmp.ge.s32.totalorder %s34, 4
      %s41 = sphi 0, %s53
      %s42 = sphi 0, %s49
      %s43 = sphi 0, %s41
      %s44 = sphi 0, %s42
      %s45 = sphi 0, %s43
      %s46 = sphi 0, %s44
      %s56 = sphi 0, %s58
      %s59 = sphi 0, %s56
      %s60 = sphi 0, %s59
      %s76 = sphi 0, %s60
      %s82 = sphi 0, %s84
      %s85 = sphi 0, %s82
      %s86 = sphi 0, %s85
      %s102 = sphi 0, %s86
      %s106 = sphi 0, %s106
      %s108 = sphi 0, %s106
      %s109 = sphi 0, %s108
      %s123 = sphi 0, %s109
      %s127 = sphi 0, %s127
      %s129 = sphi 0, %s127
      %s130 = sphi 0, %s129
      %s144 = sphi 0, %s130
      %s148 = sphi 0, %s148
      %s150 = sphi 0, %s148
      %s151 = sphi 0, %s150
      %s165 = sphi 0, %s151
      %s169 = sphi 0, %s169
      %s171 = sphi 0, %s169
      %s172 = sphi 0, %s171
      %s186 = sphi 0, %s172
      %s190 = sphi 0, %s190
      %s192 = sphi 0, %s190
      %s193 = sphi 0, %s192
      %s207 = sphi 0, %s193
      %s211 = sphi 0, %s211
      %s213 = sphi 0, %s211
      %s214 = sphi 0, %s213
      %s228 = sphi 0, %s214
      %s232 = sphi 0, %s232
      %s234 = sphi 0, %s232
      %s235 = sphi 0, %s234
      %s249 = sphi 0, %s235
      %s253 = sphi 0, %s253
      %s255 = sphi 0, %s253
      %s256 = sphi 0, %s255
      %s270 = sphi 0, %s256
      %s274 = sphi 0, %s274
      %s276 = sphi 0, %s274
      %s277 = sphi 0, %s276
      %s291 = sphi 0, %s277
      %s295 = sphi 0, %s295
      %s297 = sphi 0, %s295
      %s298 = sphi 0, %s297
      %s312 = sphi 0, %s298
      %s316 = sphi 0, %s316
      %s318 = sphi 0, %s316
      %s319 = sphi 0, %s318
      %s333 = sphi 0, %s319
      %s337 = sphi 0, %s337
      %s339 = sphi 0, %s337
      %s340 = sphi 0, %s339
      %s354 = sphi 0, %s340
      %s358 = sphi 0, %s358
      %s360 = sphi 0, %s358
      %s361 = sphi 0, %s360
      %s375 = sphi 0, %s361
      %s379 = sphi 0, %s379
      %s381 = sphi 0, %s379
      %s382 = sphi 0, %s381
      %s396 = sphi 0, %s382
      %s400 = sphi 0, %s400
      %s402 = sphi 0, %s400
      %s403 = sphi 0, %s402
      %s417 = sphi 0, %s403
      %s421 = sphi 0, %s421
      %s423 = sphi 0, %s421
      %s424 = sphi 0, %s423
      %s438 = sphi 0, %s424
      %s446 = sphi 0, %s448
      %s449 = sphi 0, %s446
      %s450 = sphi 0, %s449
      %s466 = sphi 0, %s450
    $region4: #{tpu_custom_call.1} parent=1 // loop_header_branch
      %37 = sbr.rel (%p35) target = $region8
    $region5: #{tpu_custom_call.1} parent=1 // loop_body
      %s39 = ssub.s32 %s34, 1
      %s40 = ssub.s32 %s34, 2
      %s47 = sadd.s32 1, %s42
      %p48 = scmp.ge.s32.totalorder %s47, 1
      %s49 = scalar_select %p48, 0, %s47
      %s50 = sadd.s32 1, %s41
      %s51 = scalar_select %p48, %s50, %s41
      %p52 = scmp.ge.s32.totalorder %s51, 2
      %s53 = scalar_select %p52, 0, %s51
      %s54 = ssub.s32 %s41, %s53
      %p55 = scmp.eq.s32.totalorder %s54, 0
      %s57 = sadd.s32 %s56, 1
      %s58 = scalar_select %p55, %s56, %s57
      %p61 = pneg %p55
      %p62 = scmp.eq.s32.totalorder %s34, 1
      %p63 = por %p61, %p62
      %p64 = scmp.ne.s32.totalorder %s56, %s59
      %p65 = scmp.eq.s32.totalorder %s34, 0
      %p66 = por %p64, %p65
      %p67 = scmp.ne.s32.totalorder %s56, %s59
      %p68 = scmp.eq.s32.totalorder %s39, 1
      %p69 = por %p67, %p68
      %p70 = scmp.ne.s32.totalorder %s59, %s60
      %p71 = scmp.eq.s32.totalorder %s39, 0
      %p72 = por %p70, %p71
      %p73 = scmp.ne.s32.totalorder %s59, %s60
      %p74 = scmp.eq.s32.totalorder %s40, 1
      %p75 = por %p73, %p74
      %p77 = scmp.ne.s32.totalorder %s60, %s76
      %p78 = scmp.eq.s32.totalorder %s40, 0
      %p79 = por %p77, %p78
      %s80 = ssub.s32 %s41, %s53
      %p81 = scmp.eq.s32.totalorder %s80, 0
      %s83 = sadd.s32 %s82, 1
      %s84 = scalar_select %p81, %s82, %s83
      %p87 = pneg %p81
      %p88 = scmp.eq.s32.totalorder %s34, 1
      %p89 = por %p87, %p88
      %p90 = scmp.ne.s32.totalorder %s82, %s85
      %p91 = scmp.eq.s32.totalorder %s34, 0
      %p92 = por %p90, %p91
      %p93 = scmp.ne.s32.totalorder %s82, %s85
      %p94 = scmp.eq.s32.totalorder %s39, 1
      %p95 = por %p93, %p94
      %p96 = scmp.ne.s32.totalorder %s85, %s86
      %p97 = scmp.eq.s32.totalorder %s39, 0
      %p98 = por %p96, %p97
      %p99 = scmp.ne.s32.totalorder %s85, %s86
      %p100 = scmp.eq.s32.totalorder %s40, 1
      %p101 = por %p99, %p100
      %p103 = scmp.ne.s32.totalorder %s86, %s102
      %p104 = scmp.eq.s32.totalorder %s40, 0
      %p105 = por %p103, %p104
      %s107 = sadd.s32 %s106, 1
      %p110 = scmp.eq.s32.totalorder %s34, 1
      %p111 = scmp.ne.s32.totalorder %s106, %s108
      %p112 = scmp.eq.s32.totalorder %s34, 0
      %p113 = por %p111, %p112
      %p114 = scmp.ne.s32.totalorder %s106, %s108
      %p115 = scmp.eq.s32.totalorder %s39, 1
      %p116 = por %p114, %p115
      %p117 = scmp.ne.s32.totalorder %s108, %s109
      %p118 = scmp.eq.s32.totalorder %s39, 0
      %p119 = por %p117, %p118
      %p120 = scmp.ne.s32.totalorder %s108, %s109
      %p121 = scmp.eq.s32.totalorder %s40, 1
      %p122 = por %p120, %p121
      %p124 = scmp.ne.s32.totalorder %s109, %s123
      %p125 = scmp.eq.s32.totalorder %s40, 0
      %p126 = por %p124, %p125
      %s128 = sadd.s32 %s127, 1
      %p131 = scmp.eq.s32.totalorder %s34, 1
      %p132 = scmp.ne.s32.totalorder %s127, %s129
      %p133 = scmp.eq.s32.totalorder %s34, 0
      %p134 = por %p132, %p133
      %p135 = scmp.ne.s32.totalorder %s127, %s129
      %p136 = scmp.eq.s32.totalorder %s39, 1
      %p137 = por %p135, %p136
      %p138 = scmp.ne.s32.totalorder %s129, %s130
      %p139 = scmp.eq.s32.totalorder %s39, 0
      %p140 = por %p138, %p139
      %p141 = scmp.ne.s32.totalorder %s129, %s130
      %p142 = scmp.eq.s32.totalorder %s40, 1
      %p143 = por %p141, %p142
      %p145 = scmp.ne.s32.totalorder %s130, %s144
      %p146 = scmp.eq.s32.totalorder %s40, 0
      %p147 = por %p145, %p146
      %s149 = sadd.s32 %s148, 1
      %p152 = scmp.eq.s32.totalorder %s34, 1
      %p153 = scmp.ne.s32.totalorder %s148, %s150
      %p154 = scmp.eq.s32.totalorder %s34, 0
      %p155 = por %p153, %p154
      %p156 = scmp.ne.s32.totalorder %s148, %s150
      %p157 = scmp.eq.s32.totalorder %s39, 1
      %p158 = por %p156, %p157
      %p159 = scmp.ne.s32.totalorder %s150, %s151
      %p160 = scmp.eq.s32.totalorder %s39, 0
      %p161 = por %p159, %p160
      %p162 = scmp.ne.s32.totalorder %s150, %s151
      %p163 = scmp.eq.s32.totalorder %s40, 1
      %p164 = por %p162, %p163
      %p166 = scmp.ne.s32.totalorder %s151, %s165
      %p167 = scmp.eq.s32.totalorder %s40, 0
      %p168 = por %p166, %p167
      %s170 = sadd.s32 %s169, 1
      %p173 = scmp.eq.s32.totalorder %s34, 1
      %p174 = scmp.ne.s32.totalorder %s169, %s171
      %p175 = scmp.eq.s32.totalorder %s34, 0
      %p176 = por %p174, %p175
      %p177 = scmp.ne.s32.totalorder %s169, %s171
      %p178 = scmp.eq.s32.totalorder %s39, 1
      %p179 = por %p177, %p178
      %p180 = scmp.ne.s32.totalorder %s171, %s172
      %p181 = scmp.eq.s32.totalorder %s39, 0
      %p182 = por %p180, %p181
      %p183 = scmp.ne.s32.totalorder %s171, %s172
      %p184 = scmp.eq.s32.totalorder %s40, 1
      %p185 = por %p183, %p184
      %p187 = scmp.ne.s32.totalorder %s172, %s186
      %p188 = scmp.eq.s32.totalorder %s40, 0
      %p189 = por %p187, %p188
      %s191 = sadd.s32 %s190, 1
      %p194 = scmp.eq.s32.totalorder %s34, 1
      %p195 = scmp.ne.s32.totalorder %s190, %s192
      %p196 = scmp.eq.s32.totalorder %s34, 0
      %p197 = por %p195, %p196
      %p198 = scmp.ne.s32.totalorder %s190, %s192
      %p199 = scmp.eq.s32.totalorder %s39, 1
      %p200 = por %p198, %p199
      %p201 = scmp.ne.s32.totalorder %s192, %s193
      %p202 = scmp.eq.s32.totalorder %s39, 0
      %p203 = por %p201, %p202
      %p204 = scmp.ne.s32.totalorder %s192, %s193
      %p205 = scmp.eq.s32.totalorder %s40, 1
      %p206 = por %p204, %p205
      %p208 = scmp.ne.s32.totalorder %s193, %s207
      %p209 = scmp.eq.s32.totalorder %s40, 0
      %p210 = por %p208, %p209
      %s212 = sadd.s32 %s211, 1
      %p215 = scmp.eq.s32.totalorder %s34, 1
      %p216 = scmp.ne.s32.totalorder %s211, %s213
      %p217 = scmp.eq.s32.totalorder %s34, 0
      %p218 = por %p216, %p217
      %p219 = scmp.ne.s32.totalorder %s211, %s213
      %p220 = scmp.eq.s32.totalorder %s39, 1
      %p221 = por %p219, %p220
      %p222 = scmp.ne.s32.totalorder %s213, %s214
      %p223 = scmp.eq.s32.totalorder %s39, 0
      %p224 = por %p222, %p223
      %p225 = scmp.ne.s32.totalorder %s213, %s214
      %p226 = scmp.eq.s32.totalorder %s40, 1
      %p227 = por %p225, %p226
      %p229 = scmp.ne.s32.totalorder %s214, %s228
      %p230 = scmp.eq.s32.totalorder %s40, 0
      %p231 = por %p229, %p230
      %s233 = sadd.s32 %s232, 1
      %p236 = scmp.eq.s32.totalorder %s34, 1
      %p237 = scmp.ne.s32.totalorder %s232, %s234
      %p238 = scmp.eq.s32.totalorder %s34, 0
      %p239 = por %p237, %p238
      %p240 = scmp.ne.s32.totalorder %s232, %s234
      %p241 = scmp.eq.s32.totalorder %s39, 1
      %p242 = por %p240, %p241
      %p243 = scmp.ne.s32.totalorder %s234, %s235
      %p244 = scmp.eq.s32.totalorder %s39, 0
      %p245 = por %p243, %p244
      %p246 = scmp.ne.s32.totalorder %s234, %s235
      %p247 = scmp.eq.s32.totalorder %s40, 1
      %p248 = por %p246, %p247
      %p250 = scmp.ne.s32.totalorder %s235, %s249
      %p251 = scmp.eq.s32.totalorder %s40, 0
      %p252 = por %p250, %p251
      %s254 = sadd.s32 %s253, 1
      %p257 = scmp.eq.s32.totalorder %s34, 1
      %p258 = scmp.ne.s32.totalorder %s253, %s255
      %p259 = scmp.eq.s32.totalorder %s34, 0
      %p260 = por %p258, %p259
      %p261 = scmp.ne.s32.totalorder %s253, %s255
      %p262 = scmp.eq.s32.totalorder %s39, 1
      %p263 = por %p261, %p262
      %p264 = scmp.ne.s32.totalorder %s255, %s256
      %p265 = scmp.eq.s32.totalorder %s39, 0
      %p266 = por %p264, %p265
      %p267 = scmp.ne.s32.totalorder %s255, %s256
      %p268 = scmp.eq.s32.totalorder %s40, 1
      %p269 = por %p267, %p268
      %p271 = scmp.ne.s32.totalorder %s256, %s270
      %p272 = scmp.eq.s32.totalorder %s40, 0
      %p273 = por %p271, %p272
      %s275 = sadd.s32 %s274, 1
      %p278 = scmp.eq.s32.totalorder %s34, 1
      %p279 = scmp.ne.s32.totalorder %s274, %s276
      %p280 = scmp.eq.s32.totalorder %s34, 0
      %p281 = por %p279, %p280
      %p282 = scmp.ne.s32.totalorder %s274, %s276
      %p283 = scmp.eq.s32.totalorder %s39, 1
      %p284 = por %p282, %p283
      %p285 = scmp.ne.s32.totalorder %s276, %s277
      %p286 = scmp.eq.s32.totalorder %s39, 0
      %p287 = por %p285, %p286
      %p288 = scmp.ne.s32.totalorder %s276, %s277
      %p289 = scmp.eq.s32.totalorder %s40, 1
      %p290 = por %p288, %p289
      %p292 = scmp.ne.s32.totalorder %s277, %s291
      %p293 = scmp.eq.s32.totalorder %s40, 0
      %p294 = por %p292, %p293
      %s296 = sadd.s32 %s295, 1
      %p299 = scmp.eq.s32.totalorder %s34, 1
      %p300 = scmp.ne.s32.totalorder %s295, %s297
      %p301 = scmp.eq.s32.totalorder %s34, 0
      %p302 = por %p300, %p301
      %p303 = scmp.ne.s32.totalorder %s295, %s297
      %p304 = scmp.eq.s32.totalorder %s39, 1
      %p305 = por %p303, %p304
      %p306 = scmp.ne.s32.totalorder %s297, %s298
      %p307 = scmp.eq.s32.totalorder %s39, 0
      %p308 = por %p306, %p307
      %p309 = scmp.ne.s32.totalorder %s297, %s298
      %p310 = scmp.eq.s32.totalorder %s40, 1
      %p311 = por %p309, %p310
      %p313 = scmp.ne.s32.totalorder %s298, %s312
      %p314 = scmp.eq.s32.totalorder %s40, 0
      %p315 = por %p313, %p314
      %s317 = sadd.s32 %s316, 1
      %p320 = scmp.eq.s32.totalorder %s34, 1
      %p321 = scmp.ne.s32.totalorder %s316, %s318
      %p322 = scmp.eq.s32.totalorder %s34, 0
      %p323 = por %p321, %p322
      %p324 = scmp.ne.s32.totalorder %s316, %s318
      %p325 = scmp.eq.s32.totalorder %s39, 1
      %p326 = por %p324, %p325
      %p327 = scmp.ne.s32.totalorder %s318, %s319
      %p328 = scmp.eq.s32.totalorder %s39, 0
      %p329 = por %p327, %p328
      %p330 = scmp.ne.s32.totalorder %s318, %s319
      %p331 = scmp.eq.s32.totalorder %s40, 1
      %p332 = por %p330, %p331
      %p334 = scmp.ne.s32.totalorder %s319, %s333
      %p335 = scmp.eq.s32.totalorder %s40, 0
      %p336 = por %p334, %p335
      %s338 = sadd.s32 %s337, 1
      %p341 = scmp.eq.s32.totalorder %s34, 1
      %p342 = scmp.ne.s32.totalorder %s337, %s339
      %p343 = scmp.eq.s32.totalorder %s34, 0
      %p344 = por %p342, %p343
      %p345 = scmp.ne.s32.totalorder %s337, %s339
      %p346 = scmp.eq.s32.totalorder %s39, 1
      %p347 = por %p345, %p346
      %p348 = scmp.ne.s32.totalorder %s339, %s340
      %p349 = scmp.eq.s32.totalorder %s39, 0
      %p350 = por %p348, %p349
      %p351 = scmp.ne.s32.totalorder %s339, %s340
      %p352 = scmp.eq.s32.totalorder %s40, 1
      %p353 = por %p351, %p352
      %p355 = scmp.ne.s32.totalorder %s340, %s354
      %p356 = scmp.eq.s32.totalorder %s40, 0
      %p357 = por %p355, %p356
      %s359 = sadd.s32 %s358, 1
      %p362 = scmp.eq.s32.totalorder %s34, 1
      %p363 = scmp.ne.s32.totalorder %s358, %s360
      %p364 = scmp.eq.s32.totalorder %s34, 0
      %p365 = por %p363, %p364
      %p366 = scmp.ne.s32.totalorder %s358, %s360
      %p367 = scmp.eq.s32.totalorder %s39, 1
      %p368 = por %p366, %p367
      %p369 = scmp.ne.s32.totalorder %s360, %s361
      %p370 = scmp.eq.s32.totalorder %s39, 0
      %p371 = por %p369, %p370
      %p372 = scmp.ne.s32.totalorder %s360, %s361
      %p373 = scmp.eq.s32.totalorder %s40, 1
      %p374 = por %p372, %p373
      %p376 = scmp.ne.s32.totalorder %s361, %s375
      %p377 = scmp.eq.s32.totalorder %s40, 0
      %p378 = por %p376, %p377
      %s380 = sadd.s32 %s379, 1
      %p383 = scmp.eq.s32.totalorder %s34, 1
      %p384 = scmp.ne.s32.totalorder %s379, %s381
      %p385 = scmp.eq.s32.totalorder %s34, 0
      %p386 = por %p384, %p385
      %p387 = scmp.ne.s32.totalorder %s379, %s381
      %p388 = scmp.eq.s32.totalorder %s39, 1
      %p389 = por %p387, %p388
      %p390 = scmp.ne.s32.totalorder %s381, %s382
      %p391 = scmp.eq.s32.totalorder %s39, 0
      %p392 = por %p390, %p391
      %p393 = scmp.ne.s32.totalorder %s381, %s382
      %p394 = scmp.eq.s32.totalorder %s40, 1
      %p395 = por %p393, %p394
      %p397 = scmp.ne.s32.totalorder %s382, %s396
      %p398 = scmp.eq.s32.totalorder %s40, 0
      %p399 = por %p397, %p398
      %s401 = sadd.s32 %s400, 1
      %p404 = scmp.eq.s32.totalorder %s34, 1
      %p405 = scmp.ne.s32.totalorder %s400, %s402
      %p406 = scmp.eq.s32.totalorder %s34, 0
      %p407 = por %p405, %p406
      %p408 = scmp.ne.s32.totalorder %s400, %s402
      %p409 = scmp.eq.s32.totalorder %s39, 1
      %p410 = por %p408, %p409
      %p411 = scmp.ne.s32.totalorder %s402, %s403
      %p412 = scmp.eq.s32.totalorder %s39, 0
      %p413 = por %p411, %p412
      %p414 = scmp.ne.s32.totalorder %s402, %s403
      %p415 = scmp.eq.s32.totalorder %s40, 1
      %p416 = por %p414, %p415
      %p418 = scmp.ne.s32.totalorder %s403, %s417
      %p419 = scmp.eq.s32.totalorder %s40, 0
      %p420 = por %p418, %p419
      %s422 = sadd.s32 %s421, 1
      %p425 = scmp.eq.s32.totalorder %s34, 1
      %p426 = scmp.ne.s32.totalorder %s421, %s423
      %p427 = scmp.eq.s32.totalorder %s34, 0
      %p428 = por %p426, %p427
      %p429 = scmp.ne.s32.totalorder %s421, %s423
      %p430 = scmp.eq.s32.totalorder %s39, 1
      %p431 = por %p429, %p430
      %p432 = scmp.ne.s32.totalorder %s423, %s424
      %p433 = scmp.eq.s32.totalorder %s39, 0
      %p434 = por %p432, %p433
      %p435 = scmp.ne.s32.totalorder %s423, %s424
      %p436 = scmp.eq.s32.totalorder %s40, 1
      %p437 = por %p435, %p436
      %p439 = scmp.ne.s32.totalorder %s424, %s438
      %p440 = scmp.eq.s32.totalorder %s40, 0
      %p441 = por %p439, %p440
      %s442 = ssub.s32 %s41, %s53
      %s443 = ssub.s32 %s42, %s49
      %s444 = sor.u32 %s442, %s443
      %p445 = scmp.eq.s32.totalorder %s444, 0
      %s447 = sadd.s32 %s446, 1
      %s448 = scalar_select %p445, %s446, %s447
      %p451 = pneg %p445
      %p452 = scmp.eq.s32.totalorder %s34, 1
      %p453 = por %p451, %p452
      %p454 = scmp.ne.s32.totalorder %s446, %s449
      %p455 = scmp.eq.s32.totalorder %s34, 0
      %p456 = por %p454, %p455
      %p457 = scmp.ne.s32.totalorder %s446, %s449
      %p458 = scmp.eq.s32.totalorder %s39, 1
      %p459 = por %p457, %p458
      %p460 = scmp.ne.s32.totalorder %s449, %s450
      %p461 = scmp.eq.s32.totalorder %s39, 0
      %p462 = por %p460, %p461
      %p463 = scmp.ne.s32.totalorder %s449, %s450
      %p464 = scmp.eq.s32.totalorder %s40, 1
      %p465 = por %p463, %p464
      %p467 = scmp.ne.s32.totalorder %s450, %s466
      %p468 = scmp.eq.s32.totalorder %s40, 0
      %p469 = por %p467, %p468
      %p470 = scmp.le.s32.totalorder 1, %s34
      %p471 = scmp.lt.s32.totalorder %s34, 3
      %p472 = pnand %p470, %p471
      %p473 = pneg %p472
      // Predicated region
      $region9: #{tpu_custom_call.1} parent=5 // pred_check
        _
      $region10: #{tpu_custom_call.1} parent=5 // pred_check_branch
        %475 = sbr.rel (%p472) target = $region12
      $region11: #{tpu_custom_call.1} parent=5 // pred_region
        %s476 = ssub.s32 %s34, 1
        // Predicated region
        $region13: #{tpu_custom_call.1} parent=11 // pred_check
          %p477 = pneg %p119
        $region14: #{tpu_custom_call.1} parent=11 // pred_check_branch
          %479 = sbr.rel (%p477) target = $region16
        $region15: #{tpu_custom_call.1} parent=11 // pred_region
          _
        $region16: #{tpu_custom_call.1} parent=11 // pred_fallthru
          _
        // Predicated region
        $region17: #{tpu_custom_call.1} parent=11 // pred_check
          %p480 = pneg %p140
        $region18: #{tpu_custom_call.1} parent=11 // pred_check_branch
          %482 = sbr.rel (%p480) target = $region20
        $region19: #{tpu_custom_call.1} parent=11 // pred_region
          %s484 = ssub.s32 16, 16
          %485 = vsyncadd [#allocation8], %s484
          %s487 = sshll.u32 [#allocation7], 4
          %s488 = int_to_ptr.vmem [resolvable:$true] %s487
          %490 = dma.hbm_to_vmem [thread:$0]  %s3, 16, %s488, [#allocation8]
        $region20: #{tpu_custom_call.1} parent=11 // pred_fallthru
          _
        // Predicated region
        $region21: #{tpu_custom_call.1} parent=11 // pred_check
          %p491 = pneg %p161
        $region22: #{tpu_custom_call.1} parent=11 // pred_check_branch
          %493 = sbr.rel (%p491) target = $region24
        $region23: #{tpu_custom_call.1} parent=11 // pred_region
          _
        $region24: #{tpu_custom_call.1} parent=11 // pred_fallthru
          _
        // Predicated region
        $region25: #{tpu_custom_call.1} parent=11 // pred_check
          %p494 = pneg %p182
        $region26: #{tpu_custom_call.1} parent=11 // pred_check_branch
          %496 = sbr.rel (%p494) target = $region28
        $region27: #{tpu_custom_call.1} parent=11 // pred_region
          %s498 = ssub.s32 16, 16
          %499 = vsyncadd [#allocation8], %s498
          %s501 = sshll.u32 [#allocation9], 4
          %s502 = int_to_ptr.vmem [resolvable:$true] %s501
          %504 = dma.hbm_to_vmem [thread:$0]  %s5, 16, %s502, [#allocation8]
        $region28: #{tpu_custom_call.1} parent=11 // pred_fallthru
          _
        // Predicated region
        $region29: #{tpu_custom_call.1} parent=11 // pred_check
          %p505 = pneg %p203
        $region30: #{tpu_custom_call.1} parent=11 // pred_check_branch
          %507 = sbr.rel (%p505) target = $region32
        $region31: #{tpu_custom_call.1} parent=11 // pred_region
          _
        $region32: #{tpu_custom_call.1} parent=11 // pred_fallthru
          _
        // Predicated region
        $region33: #{tpu_custom_call.1} parent=11 // pred_check
          %p508 = pneg %p224
        $region34: #{tpu_custom_call.1} parent=11 // pred_check_branch
          %510 = sbr.rel (%p508) target = $region36
        $region35: #{tpu_custom_call.1} parent=11 // pred_region
          %s512 = ssub.s32 16, 16
          %513 = vsyncadd [#allocation11], %s512
          %s515 = sshll.u32 [#allocation10], 4
          %s516 = int_to_ptr.vmem [resolvable:$true] %s515
          %518 = dma.hbm_to_vmem [thread:$0]  %s7, 16, %s516, [#allocation11]
        $region36: #{tpu_custom_call.1} parent=11 // pred_fallthru
          _
        // Predicated region
        $region37: #{tpu_custom_call.1} parent=11 // pred_check
          %p519 = pneg %p245
        $region38: #{tpu_custom_call.1} parent=11 // pred_check_branch
          %521 = sbr.rel (%p519) target = $region40
        $region39: #{tpu_custom_call.1} parent=11 // pred_region
          %s523 = ssub.s32 256, 256
          %524 = vsyncadd [#allocation11], %s523
          %s525 = sshll.u32 [#allocation12], 4
          %s526 = int_to_ptr.vmem [resolvable:$true] %s525
          %531 = dma.hbm_to_vmem [thread:$0]  %s8, 256, %s526, [#allocation11], 64, 64, 4
        $region40: #{tpu_custom_call.1} parent=11 // pred_fallthru
          _
        // Predicated region
        $region41: #{tpu_custom_call.1} parent=11 // pred_check
          %p532 = pneg %p266
        $region42: #{tpu_custom_call.1} parent=11 // pred_check_branch
          %534 = sbr.rel (%p532) target = $region44
        $region43: #{tpu_custom_call.1} parent=11 // pred_region
          %s536 = ssub.s32 16, 16
          %537 = vsyncadd [#allocation14], %s536
          %s539 = sshll.u32 [#allocation13], 4
          %s540 = int_to_ptr.vmem [resolvable:$true] %s539
          %542 = dma.hbm_to_vmem [thread:$0]  %s9, 16, %s540, [#allocation14]
        $region44: #{tpu_custom_call.1} parent=11 // pred_fallthru
          _
        // Predicated region
        $region45: #{tpu_custom_call.1} parent=11 // pred_check
          %p543 = pneg %p287
        $region46: #{tpu_custom_call.1} parent=11 // pred_check_branch
          %545 = sbr.rel (%p543) target = $region48
        $region47: #{tpu_custom_call.1} parent=11 // pred_region
          _
        $region48: #{tpu_custom_call.1} parent=11 // pred_fallthru
          _
        // Predicated region
        $region49: #{tpu_custom_call.1} parent=11 // pred_check
          %p546 = pneg %p308
        $region50: #{tpu_custom_call.1} parent=11 // pred_check_branch
          %548 = sbr.rel (%p546) target = $region52
        $region51: #{tpu_custom_call.1} parent=11 // pred_region
          %s550 = ssub.s32 16, 16
          %551 = vsyncadd [#allocation14], %s550
          %s553 = sshll.u32 [#allocation15], 4
          %s554 = int_to_ptr.vmem [resolvable:$true] %s553
          %556 = dma.hbm_to_vmem [thread:$0]  %s11, 16, %s554, [#allocation14]
        $region52: #{tpu_custom_call.1} parent=11 // pred_fallthru
          _
        // Predicated region
        $region53: #{tpu_custom_call.1} parent=11 // pred_check
          %p557 = pneg %p329
        $region54: #{tpu_custom_call.1} parent=11 // pred_check_branch
          %559 = sbr.rel (%p557) target = $region56
        $region55: #{tpu_custom_call.1} parent=11 // pred_region
          %s561 = ssub.s32 16, 16
          %562 = vsyncadd [#allocation17], %s561
          %s564 = sshll.u32 [#allocation16], 4
          %s565 = int_to_ptr.vmem [resolvable:$true] %s564
          %567 = dma.hbm_to_vmem [thread:$0]  %s12, 16, %s565, [#allocation17]
        $region56: #{tpu_custom_call.1} parent=11 // pred_fallthru
          _
        // Predicated region
        $region57: #{tpu_custom_call.1} parent=11 // pred_check
          %p568 = pneg %p350
        $region58: #{tpu_custom_call.1} parent=11 // pred_check_branch
          %570 = sbr.rel (%p568) target = $region60
        $region59: #{tpu_custom_call.1} parent=11 // pred_region
          %s572 = ssub.s32 16, 16
          %573 = vsyncadd [#allocation17], %s572
          %s575 = sshll.u32 [#allocation18], 4
          %s576 = int_to_ptr.vmem [resolvable:$true] %s575
          %578 = dma.hbm_to_vmem [thread:$0]  %s13, 16, %s576, [#allocation17]
        $region60: #{tpu_custom_call.1} parent=11 // pred_fallthru
          _
        // Predicated region
        $region61: #{tpu_custom_call.1} parent=11 // pred_check
          %p579 = pneg %p371
        $region62: #{tpu_custom_call.1} parent=11 // pred_check_branch
          %581 = sbr.rel (%p579) target = $region64
        $region63: #{tpu_custom_call.1} parent=11 // pred_region
          _
        $region64: #{tpu_custom_call.1} parent=11 // pred_fallthru
          _
        // Predicated region
        $region65: #{tpu_custom_call.1} parent=11 // pred_check
          %p582 = pneg %p392
        $region66: #{tpu_custom_call.1} parent=11 // pred_check_branch
          %584 = sbr.rel (%p582) target = $region68
        $region67: #{tpu_custom_call.1} parent=11 // pred_region
          _
        $region68: #{tpu_custom_call.1} parent=11 // pred_fallthru
          _
        // Predicated region
        $region69: #{tpu_custom_call.1} parent=11 // pred_check
          %p585 = pneg %p413
        $region70: #{tpu_custom_call.1} parent=11 // pred_check_branch
          %587 = sbr.rel (%p585) target = $region72
        $region71: #{tpu_custom_call.1} parent=11 // pred_region
          _
        $region72: #{tpu_custom_call.1} parent=11 // pred_fallthru
          _
        // Predicated region
        $region73: #{tpu_custom_call.1} parent=11 // pred_check
          %p588 = pneg %p434
        $region74: #{tpu_custom_call.1} parent=11 // pred_check_branch
          %590 = sbr.rel (%p588) target = $region76
        $region75: #{tpu_custom_call.1} parent=11 // pred_region
          _
        $region76: #{tpu_custom_call.1} parent=11 // pred_fallthru
          _
      $region12: #{tpu_custom_call.1} parent=5 // pred_fallthru
        _
      %p591 = scmp.lt.s32.totalorder %s34, 2
      // Predicated region
      $region77: #{tpu_custom_call.1} parent=5 // pred_check
        %p592 = pneg %p591
      $region78: #{tpu_custom_call.1} parent=5 // pred_check_branch
        %594 = sbr.rel (%p592) target = $region80
      $region79: #{tpu_custom_call.1} parent=5 // pred_region
        // Predicated region
        $region81: #{tpu_custom_call.1} parent=79 // pred_check
          %p595 = pneg %p66
        $region82: #{tpu_custom_call.1} parent=79 // pred_check_branch
          %597 = sbr.rel (%p595) target = $region84
        $region83: #{tpu_custom_call.1} parent=79 // pred_region
          %p598 = scmp.lt.s32.totalorder %s41, 1
          %s599 = scalar_select %p598, %s41, 1
          %s600 = smul.addr %s599, 8
          %s601 = scalar_lea.vmem %s0, %s600
        $region84: #{tpu_custom_call.1} parent=79 // pred_fallthru
          _
        // Predicated region
        $region85: #{tpu_custom_call.1} parent=79 // pred_check
          %p602 = pneg %p92
        $region86: #{tpu_custom_call.1} parent=79 // pred_check_branch
          %604 = sbr.rel (%p602) target = $region88
        $region87: #{tpu_custom_call.1} parent=79 // pred_region
          %s605 = sand.u32 %s82, 1
          %s606 = scalar_lea.sflag [#allocation5], %s605
          %s607 = sand.u32 %s82, 1
          %s608 = scalar_lea.vmem [#allocation4], %s607
          %s610 = ssub.s32 16, 16
          %611 = vsyncadd %s606, %s610
          %s612 = smul.addr %s41, 16
          %s613 = scalar_lea.hbm %s1, %s612
          %s615 = sshll.u32 %s608, 4
          %s616 = int_to_ptr.vmem [resolvable:$true] %s615
          %618 = dma.hbm_to_vmem [thread:$0]  %s613, 16, %s616, %s606
        $region88: #{tpu_custom_call.1} parent=79 // pred_fallthru
          _
      $region80: #{tpu_custom_call.1} parent=5 // pred_fallthru
        _
      %p619 = scmp.le.s32.totalorder 1, %s34
      %p620 = scmp.lt.s32.totalorder %s34, 3
      %p621 = pnand %p619, %p620
      %p622 = pneg %p621
      // Predicated region
      $region89: #{tpu_custom_call.1} parent=5 // pred_check
        _
      $region90: #{tpu_custom_call.1} parent=5 // pred_check_branch
        %624 = sbr.rel (%p621) target = $region92
      $region91: #{tpu_custom_call.1} parent=5 // pred_region
        %s625 = ssub.s32 %s34, 1
        %s626 = sand.u32 %s85, 1
        %s627 = scalar_lea.sflag [#allocation5], %s626
        %s628 = sand.u32 %s85, 1
        %s629 = scalar_lea.vmem [#allocation4], %s628
        // Predicated region
        $region93: #{tpu_custom_call.1} parent=91 // pred_check
          %p630 = pneg %p98
        $region94: #{tpu_custom_call.1} parent=91 // pred_check_branch
          %632 = sbr.rel (%p630) target = $region96
        $region95: #{tpu_custom_call.1} parent=91 // pred_region
          %633 = dma.done %s627, 16
        $region96: #{tpu_custom_call.1} parent=91 // pred_fallthru
          _
        // Predicated region
        $region97: #{tpu_custom_call.1} parent=91 // pred_check
          %p634 = pneg %p140
        $region98: #{tpu_custom_call.1} parent=91 // pred_check_branch
          %636 = sbr.rel (%p634) target = $region100
        $region99: #{tpu_custom_call.1} parent=91 // pred_region
          %637 = dma.done [#allocation8], 16
        $region100: #{tpu_custom_call.1} parent=91 // pred_fallthru
          _
        // Predicated region
        $region101: #{tpu_custom_call.1} parent=91 // pred_check
          %p638 = pneg %p182
        $region102: #{tpu_custom_call.1} parent=91 // pred_check_branch
          %640 = sbr.rel (%p638) target = $region104
        $region103: #{tpu_custom_call.1} parent=91 // pred_region
          %641 = dma.done [#allocation8], 16
        $region104: #{tpu_custom_call.1} parent=91 // pred_fallthru
          _
        // Predicated region
        $region105: #{tpu_custom_call.1} parent=91 // pred_check
          %p642 = pneg %p224
        $region106: #{tpu_custom_call.1} parent=91 // pred_check_branch
          %644 = sbr.rel (%p642) target = $region108
        $region107: #{tpu_custom_call.1} parent=91 // pred_region
          %645 = dma.done [#allocation11], 16
        $region108: #{tpu_custom_call.1} parent=91 // pred_fallthru
          _
        // Predicated region
        $region109: #{tpu_custom_call.1} parent=91 // pred_check
          %p646 = pneg %p245
        $region110: #{tpu_custom_call.1} parent=91 // pred_check_branch
          %648 = sbr.rel (%p646) target = $region112
        $region111: #{tpu_custom_call.1} parent=91 // pred_region
          %649 = dma.done [#allocation11], 256
        $region112: #{tpu_custom_call.1} parent=91 // pred_fallthru
          _
        // Predicated region
        $region113: #{tpu_custom_call.1} parent=91 // pred_check
          %p650 = pneg %p266
        $region114: #{tpu_custom_call.1} parent=91 // pred_check_branch
          %652 = sbr.rel (%p650) target = $region116
        $region115: #{tpu_custom_call.1} parent=91 // pred_region
          %653 = dma.done [#allocation14], 16
        $region116: #{tpu_custom_call.1} parent=91 // pred_fallthru
          _
        // Predicated region
        $region117: #{tpu_custom_call.1} parent=91 // pred_check
          %p654 = pneg %p308
        $region118: #{tpu_custom_call.1} parent=91 // pred_check_branch
          %656 = sbr.rel (%p654) target = $region120
        $region119: #{tpu_custom_call.1} parent=91 // pred_region
          %657 = dma.done [#allocation14], 16
        $region120: #{tpu_custom_call.1} parent=91 // pred_fallthru
          _
        // Predicated region
        $region121: #{tpu_custom_call.1} parent=91 // pred_check
          %p658 = pneg %p329
        $region122: #{tpu_custom_call.1} parent=91 // pred_check_branch
          %660 = sbr.rel (%p658) target = $region124
        $region123: #{tpu_custom_call.1} parent=91 // pred_region
          %661 = dma.done [#allocation17], 16
        $region124: #{tpu_custom_call.1} parent=91 // pred_fallthru
          _
        // Predicated region
        $region125: #{tpu_custom_call.1} parent=91 // pred_check
          %p662 = pneg %p350
        $region126: #{tpu_custom_call.1} parent=91 // pred_check_branch
          %664 = sbr.rel (%p662) target = $region128
        $region127: #{tpu_custom_call.1} parent=91 // pred_region
          %665 = dma.done [#allocation17], 16
        $region128: #{tpu_custom_call.1} parent=91 // pred_fallthru
          _
        %p666 = scmp.lt.s32.totalorder %s43, 1
        %s667 = scalar_select %p666, %s43, 1
        %s668 = smul.addr %s667, 8
        %s669 = scalar_lea.vmem %s0, %s668
        %p670 = pneg %p72
        %p671 = pneg %p69
        %s672 = sand.u32 %s85, 1
        %s673 = scalar_lea.sflag [#allocation5], %s672
        %s674 = sand.u32 %s85, 1
        %s675 = scalar_lea.vmem [#allocation4], %s674
        %p676 = pneg %p98
        %p677 = pneg %p95
        %p678 = pneg %p119
        %p679 = pneg %p116
        %p680 = pneg %p140
        %p681 = pneg %p137
        %p682 = pneg %p161
        %p683 = pneg %p158
        %p684 = pneg %p182
        %p685 = pneg %p179
        %p686 = pneg %p203
        %p687 = pneg %p200
        %p688 = pneg %p224
        %p689 = pneg %p221
        %p690 = pneg %p245
        %p691 = pneg %p242
        %p692 = pneg %p266
        %p693 = pneg %p263
        %p694 = pneg %p287
        %p695 = pneg %p284
        %p696 = pneg %p308
        %p697 = pneg %p305
        %p698 = pneg %p329
        %p699 = pneg %p326
        %p700 = pneg %p350
        %p701 = pneg %p347
        %p702 = pneg %p371
        %p703 = pneg %p368
        %p704 = pneg %p392
        %p705 = pneg %p389
        %p706 = pneg %p413
        %p707 = pneg %p410
        %p708 = pneg %p434
        %p709 = pneg %p431
        %p710 = pneg %p462
        %p711 = pneg %p459
        %s712 = sand.u32 %s449, 1
        %s713 = scalar_lea.sflag [#allocation6], %s712
        %s714 = sand.u32 %s449, 1
        %s715 = smul.addr %s714, 8
        %s716 = scalar_lea.vmem [#allocation19], %s715
        %p717 = scmp.lt.s32.totalorder %s43, 1
        %s718 = scalar_select %p717, %s43, 1
        %s719 = smul.addr %s718, 8
        %s720 = scalar_lea.vmem %s0, %s719
        %v722 = vld [vmem:[%s2] sm:$0x1]
        %v723 = vld [vmem:[#allocation7] sm:$0x1]
        %p724 = scmp.eq.s32.totalorder %s44, 0
        // Predicated region
        $region129: #{tpu_custom_call.1} parent=91 // pred_check
          %p725 = pneg %p724
        $region130: #{tpu_custom_call.1} parent=91 // pred_check_branch
          %727 = sbr.rel (%p725) target = $region132
        $region131: #{tpu_custom_call.1} parent=91 // pred_region
          %v728 = vld [vmem:[%s720] sm:$0xff]
          %vm729 = vcmask 261120
          %v730 = vsel %vm729, %v728, 0.0
          %731 = vadd.xlane.f32.xlu0 %v730
          %v732 = vpop.xlane.xlu0 %731
          %v733 = vrcp.pop 32.0
          %v734 = vmul.f32 %v732, %v733
          %v735 = vsub.f32 %v728, %v734
          %v736 = vmul.f32 %v735, %v735
          %v737 = vsel %vm729, %v736, 0.0
          %738 = vadd.xlane.f32.xlu0 %v737
          %v739 = vpop.xlane.xlu0 %738
          %v740 = vmul.f32 %v739, 0.032258064
          %v741 = vrsqrt.pop %v740
          %v742 = vmul.f32 %v740, %v741
          %vm743 = vcmp.eq.f32.partialorder %v740, inf
          %v744 = vsel %vm743, %v740, %v742
          %vm745 = vcmp.eq.f32.partialorder %v740, 0.0
          %v746 = vand.u32 %v740, 2147483648
          %v747 = vsel %vm745, %v746, %v744
          %v748 = vadd.f32 %v747, 1e-06
          %v749 = vrcp.pop %v748
          %v750 = vmul.f32 %v735, %v749
          %v752 = vlaneseq
          %v753 = vshrl.u32 %v752, 7
          %v754 = vsub.s32 0, %v753
          %v755 = vrot.slane %v722, %v754
          %v757 = vmul.f32 %v750, %v755
          %v759 = vlaneseq
          %v760 = vshrl.u32 %v759, 7
          %v761 = vsub.s32 0, %v760
          %v762 = vrot.slane %v723, %v761
          %v764 = vadd.f32 %v757, %v762
          %v765 = vpack.c.bf16 %v764, %v764
          %v766 = vld [vmem:[%s6] sm:$0xf]
          %v767 = vld [vmem:[%s6 + $0x4] sm:$0xf]
          %v768 = vld [vmem:[%s6 + $0x8] sm:$0xf]
          %v769 = vld [vmem:[%s6 + $0xc] sm:$0xf]
          %v770 = vld [vmem:[#allocation10] sm:$0x1]
          %v772 = vlaneseq
          %v773 = vshrl.u32 %v772, 7
          %v774 = vsub.s32 0, %v773
          %v775 = vrot.slane %v770, %v774
          %v781 = vunpack.c.l.b16 %v766
          %v782 = vunpack.c.l.b16 %v767
          %v783 = vunpack.c.l.b16 %v768
          %v784 = vunpack.c.l.b16 %v769
          %v785 = vpack.c.b16 %v782, %v781
          %v786 = vpack.c.b16 %v784, %v783
          %v790 = vsel %vm729, %v765, 0
          %792 = vmatprep.subr.bf16.mxu0 0
          %793 = vmatpush1.bf16.msra.mxu0 %v785
          %794 = vmatprep.subr.bf16.mxu0 0
          %795 = vmatpush1.bf16.msra.mxu0 %v786
          %796 = vmatprep.subr.bf16.mxu0 0
          %797 = vmatpush1.bf16.msra.mxu0 0
          %798 = vmatprep.subr.bf16.mxu0 0
          %799 = vmatpush1.bf16.msra.mxu0 0
          %800 = vmatprep.subr.bf16.mxu0 0
          %801 = vmatpush1.bf16.msra.mxu0 0
          %802 = vmatprep.subr.bf16.mxu0 0
          %803 = vmatpush1.bf16.msra.mxu0 0
          %804 = vmatprep.subr.bf16.mxu0 0
          %805 = vmatpush1.bf16.msra.mxu0 0
          %806 = vmatprep.subr.bf16.mxu0 0
          %807 = vmatpush1.bf16.msra.mxu0 0
          %808 = vmatprep.subr.bf16.mxu0 0
          %809 = vmatpush1.bf16.msra.mxu0 0
          %810 = vmatprep.subr.bf16.mxu0 0
          %811 = vmatpush1.bf16.msra.mxu0 0
          %812 = vmatprep.subr.bf16.mxu0 0
          %813 = vmatpush1.bf16.msra.mxu0 0
          %814 = vmatprep.subr.bf16.mxu0 0
          %815 = vmatpush1.bf16.msra.mxu0 0
          %816 = vmatprep.subr.bf16.mxu0 0
          %817 = vmatpush1.bf16.msra.mxu0 0
          %818 = vmatprep.subr.bf16.mxu0 0
          %819 = vmatpush1.bf16.msra.mxu0 0
          %820 = vmatprep.subr.bf16.mxu0 0
          %821 = vmatpush1.bf16.msra.mxu0 0
          %822 = vmatprep.subr.bf16.mxu0 0
          %823 = vmatpush1.bf16.msra.mxu0 0
          %824 = vmatprep.mubr.bf16.mxu0 0
          %825 = vmatmul.mubr.bf16.gmra.mrb[0].mxu0 %v790
          %v826 = vpop.f32.mrb[0].mxu0
          %v827 = vadd.f32 %v775, %v826
          %v828 = vpop.f32.mrb[0].mxu0
          %v829 = vpop.f32.mrb[0].mxu0
          %v830 = vpop.f32.mrb[0].mxu0
          %831 = vdwg.mxu0
          %v832 = vld [vmem:[#allocation12] sm:$0xf]
          %v833 = vld [vmem:[#allocation12 + $0x4] sm:$0xf]
          %v834 = vld [vmem:[#allocation12 + $0x8] sm:$0xf]
          %v835 = vld [vmem:[#allocation12 + $0xc] sm:$0xf]
          %v836 = vld [vmem:[#allocation13] sm:$0x1]
          %v838 = vlaneseq
          %v839 = vshrl.u32 %v838, 7
          %v840 = vsub.s32 0, %v839
          %v841 = vrot.slane %v836, %v840
          %v847 = vunpack.c.l.b16 %v832
          %v848 = vunpack.c.l.b16 %v833
          %v849 = vunpack.c.l.b16 %v834
          %v850 = vunpack.c.l.b16 %v835
          %v851 = vpack.c.b16 %v848, %v847
          %v852 = vpack.c.b16 %v850, %v849
          %855 = vmatprep.subr.bf16.mxu0 0
          %856 = vmatpush1.bf16.msra.mxu0 %v851
          %857 = vmatprep.subr.bf16.mxu0 0
          %858 = vmatpush1.bf16.msra.mxu0 %v852
          %859 = vmatprep.subr.bf16.mxu0 0
          %860 = vmatpush1.bf16.msra.mxu0 0
          %861 = vmatprep.subr.bf16.mxu0 0
          %862 = vmatpush1.bf16.msra.mxu0 0
          %863 = vmatprep.subr.bf16.mxu0 0
          %864 = vmatpush1.bf16.msra.mxu0 0
          %865 = vmatprep.subr.bf16.mxu0 0
          %866 = vmatpush1.bf16.msra.mxu0 0
          %867 = vmatprep.subr.bf16.mxu0 0
          %868 = vmatpush1.bf16.msra.mxu0 0
          %869 = vmatprep.subr.bf16.mxu0 0
          %870 = vmatpush1.bf16.msra.mxu0 0
          %871 = vmatprep.subr.bf16.mxu0 0
          %872 = vmatpush1.bf16.msra.mxu0 0
          %873 = vmatprep.subr.bf16.mxu0 0
          %874 = vmatpush1.bf16.msra.mxu0 0
          %875 = vmatprep.subr.bf16.mxu0 0
          %876 = vmatpush1.bf16.msra.mxu0 0
          %877 = vmatprep.subr.bf16.mxu0 0
          %878 = vmatpush1.bf16.msra.mxu0 0
          %879 = vmatprep.subr.bf16.mxu0 0
          %880 = vmatpush1.bf16.msra.mxu0 0
          %881 = vmatprep.subr.bf16.mxu0 0
          %882 = vmatpush1.bf16.msra.mxu0 0
          %883 = vmatprep.subr.bf16.mxu0 0
          %884 = vmatpush1.bf16.msra.mxu0 0
          %885 = vmatprep.subr.bf16.mxu0 0
          %886 = vmatpush1.bf16.msra.mxu0 0
          %887 = vmatprep.mubr.bf16.mxu0 0
          %888 = vmatmul.mubr.bf16.gmra.mrb[0].mxu0 %v790
          %v889 = vpop.f32.mrb[0].mxu0
          %v890 = vadd.f32 %v841, %v889
          %v891 = vpop.f32.mrb[0].mxu0
          %v892 = vpop.f32.mrb[0].mxu0
          %v893 = vpop.f32.mrb[0].mxu0
          %894 = vdwg.mxu0
          %v895 = vpack.c.bf16 %v827, %v827
          %vm896 = vcmask 257024
          %897 = vst.msk [vmem:[#allocation2] sm:$0xf] %vm896, %v895
          %v898 = vpack.c.bf16 %v890, %v890
          %899 = vst.msk [vmem:[#allocation3] sm:$0xf] %vm896, %v898
        $region132: #{tpu_custom_call.1} parent=91 // pred_fallthru
          _
        %s900 = smul.u32 %s44, 8
        %s901 = scalar_lea.vmem %s720, %s900
        %v902 = vld [vmem:[%s901] sm:$0xff]
        %vm903 = vcmask 261120
        %v904 = vsel %vm903, %v902, 0.0
        %905 = vadd.xlane.f32.xlu0 %v904
        %v906 = vpop.xlane.xlu0 %905
        %v907 = vrcp.pop 32.0
        %v908 = vmul.f32 %v906, %v907
        %v909 = vsub.f32 %v902, %v908
        %v910 = vmul.f32 %v909, %v909
        %v911 = vsel %vm903, %v910, 0.0
        %912 = vadd.xlane.f32.xlu0 %v911
        %v913 = vpop.xlane.xlu0 %912
        %v914 = vmul.f32 %v913, 0.032258064
        %v915 = vrsqrt.pop %v914
        %v916 = vmul.f32 %v914, %v915
        %vm917 = vcmp.eq.f32.partialorder %v914, inf
        %v918 = vsel %vm917, %v914, %v916
        %vm919 = vcmp.eq.f32.partialorder %v914, 0.0
        %v920 = vand.u32 %v914, 2147483648
        %v921 = vsel %vm919, %v920, %v918
        %v922 = vadd.f32 %v921, 1e-06
        %v923 = vrcp.pop %v922
        %v924 = vmul.f32 %v909, %v923
        %v926 = vlaneseq
        %v927 = vshrl.u32 %v926, 7
        %v928 = vsub.s32 0, %v927
        %v929 = vrot.slane %v722, %v928
        %v931 = vmul.f32 %v924, %v929
        %v933 = vlaneseq
        %v934 = vshrl.u32 %v933, 7
        %v935 = vsub.s32 0, %v934
        %v936 = vrot.slane %v723, %v935
        %v938 = vadd.f32 %v931, %v936
        %v939 = vpack.c.bf16 %v938, %v938
        %v940 = vld [vmem:[%s4] sm:$0xf]
        %v941 = vld [vmem:[%s4 + $0x4] sm:$0xf]
        %v942 = vld [vmem:[%s4 + $0x8] sm:$0xf]
        %v943 = vld [vmem:[%s4 + $0xc] sm:$0xf]
        %v944 = vld [vmem:[#allocation9] sm:$0x1]
        %v946 = vlaneseq
        %v947 = vshrl.u32 %v946, 7
        %v948 = vsub.s32 0, %v947
        %v949 = vrot.slane %v944, %v948
        %v955 = vunpack.c.l.b16 %v940
        %v956 = vunpack.c.l.b16 %v941
        %v957 = vunpack.c.l.b16 %v942
        %v958 = vunpack.c.l.b16 %v943
        %v959 = vpack.c.b16 %v956, %v955
        %v960 = vpack.c.b16 %v958, %v957
        %v964 = vsel %vm903, %v939, 0
        %966 = vmatprep.subr.bf16.mxu0 0
        %967 = vmatpush1.bf16.msra.mxu0 %v959
        %968 = vmatprep.subr.bf16.mxu0 0
        %969 = vmatpush1.bf16.msra.mxu0 %v960
        %970 = vmatprep.subr.bf16.mxu0 0
        %971 = vmatpush1.bf16.msra.mxu0 0
        %972 = vmatprep.subr.bf16.mxu0 0
        %973 = vmatpush1.bf16.msra.mxu0 0
        %974 = vmatprep.subr.bf16.mxu0 0
        %975 = vmatpush1.bf16.msra.mxu0 0
        %976 = vmatprep.subr.bf16.mxu0 0
        %977 = vmatpush1.bf16.msra.mxu0 0
        %978 = vmatprep.subr.bf16.mxu0 0
        %979 = vmatpush1.bf16.msra.mxu0 0
        %980 = vmatprep.subr.bf16.mxu0 0
        %981 = vmatpush1.bf16.msra.mxu0 0
        %982 = vmatprep.subr.bf16.mxu0 0
        %983 = vmatpush1.bf16.msra.mxu0 0
        %984 = vmatprep.subr.bf16.mxu0 0
        %985 = vmatpush1.bf16.msra.mxu0 0
        %986 = vmatprep.subr.bf16.mxu0 0
        %987 = vmatpush1.bf16.msra.mxu0 0
        %988 = vmatprep.subr.bf16.mxu0 0
        %989 = vmatpush1.bf16.msra.mxu0 0
        %990 = vmatprep.subr.bf16.mxu0 0
        %991 = vmatpush1.bf16.msra.mxu0 0
        %992 = vmatprep.subr.bf16.mxu0 0
        %993 = vmatpush1.bf16.msra.mxu0 0
        %994 = vmatprep.subr.bf16.mxu0 0
        %995 = vmatpush1.bf16.msra.mxu0 0
        %996 = vmatprep.subr.bf16.mxu0 0
        %997 = vmatpush1.bf16.msra.mxu0 0
        %998 = vmatprep.mubr.bf16.mxu0 0
        %999 = vmatmul.mubr.bf16.gmra.mrb[0].mxu0 %v964
        %v1000 = vpop.f32.mrb[0].mxu0
        %v1001 = vadd.f32 %v949, %v1000
        %v1002 = vpop.f32.mrb[0].mxu0
        %v1003 = vpop.f32.mrb[0].mxu0
        %v1004 = vpop.f32.mrb[0].mxu0
        %1005 = vdwg.mxu0
        %v1006 = vmul.f32 %v1001, 0.35355338
        %v1007 = vpack.c.bf16 %v1006, %v1006
        %v1008 = vld [vmem:[%s629] sm:$0x1]
        %v1009 = vld [vmem:[#allocation2] sm:$0xf]
        %v1010 = vld [vmem:[#allocation3] sm:$0xf]
        %v1012 = vlaneseq
        %v1013 = vshrl.u32 %v1012, 7
        %v1014 = vsub.s32 0, %v1013
        %v1015 = vrot.slane %v1008, %v1014
        %vm1017 = vcmask 64512
        %v1019 = vsel %vm1017, %v1007, 0
        %v1022 = vsel %vm1017, %v1009, 0
        %1024 = vmatprep.subr.bf16.mxu0 0
        %1025 = vmatpush1.bf16.xpose.msra.mxu0 %v1022
        %1026 = vmatprep.subr.bf16.mxu0 0
        %1027 = vmatpush1.bf16.xpose.msra.mxu0 0
        %1028 = vmatprep.subr.bf16.mxu0 0
        %1029 = vmatpush1.bf16.xpose.msra.mxu0 0
        %1030 = vmatprep.subr.bf16.mxu0 0
        %1031 = vmatpush1.bf16.xpose.msra.mxu0 0
        %1032 = vmatprep.subr.bf16.mxu0 0
        %1033 = vmatpush1.bf16.xpose.msra.mxu0 0
        %1034 = vmatprep.subr.bf16.mxu0 0
        %1035 = vmatpush1.bf16.xpose.msra.mxu0 0
        %1036 = vmatprep.subr.bf16.mxu0 0
        %1037 = vmatpush1.bf16.xpose.msra.mxu0 0
        %1038 = vmatprep.subr.bf16.mxu0 0
        %1039 = vmatpush1.bf16.xpose.msra.mxu0 0
        %1040 = vmatprep.subr.bf16.mxu0 0
        %1041 = vmatpush1.bf16.xpose.msra.mxu0 0
        %1042 = vmatprep.subr.bf16.mxu0 0
        %1043 = vmatpush1.bf16.xpose.msra.mxu0 0
        %1044 = vmatprep.subr.bf16.mxu0 0
        %1045 = vmatpush1.bf16.xpose.msra.mxu0 0
        %1046 = vmatprep.subr.bf16.mxu0 0
        %1047 = vmatpush1.bf16.xpose.msra.mxu0 0
        %1048 = vmatprep.subr.bf16.mxu0 0
        %1049 = vmatpush1.bf16.xpose.msra.mxu0 0
        %1050 = vmatprep.subr.bf16.mxu0 0
        %1051 = vmatpush1.bf16.xpose.msra.mxu0 0
        %1052 = vmatprep.subr.bf16.mxu0 0
        %1053 = vmatpush1.bf16.xpose.msra.mxu0 0
        %1054 = vmatprep.subr.bf16.mxu0 0
        %1055 = vmatpush1.bf16.xpose.msra.mxu0 0
        %1056 = vmatprep.mubr.bf16.mxu0 0
        %1057 = vmatmul.mubr.bf16.gmra.mrb[0].mxu0 %v1019
        %v1058 = vpop.f32.mrb[0].mxu0
        %v1059 = vadd.f32 %v1015, %v1058
        %v1060 = vpop.f32.mrb[0].mxu0
        %v1061 = vpop.f32.mrb[0].mxu0
        %v1062 = vpop.f32.mrb[0].mxu0
        %1063 = vdwg.mxu0
        %v1064 = vsel %vm1017, %v1059, -inf
        %1065 = vmax.xlane.f32.xlu0 %v1064
        %v1066 = vpop.xlane.xlu0 %1065
        %v1067 = vsub.f32 %v1059, %v1066
        %v1068 = vmul.f32 %v1067, 1.442695
        %v1069 = vpow.pop %v1068
        %v1070 = vsel %vm1017, %v1069, 0.0
        %1071 = vadd.xlane.f32.xlu0 %v1070
        %v1072 = vpop.xlane.xlu0 %1071
        %v1073 = vrcp.pop %v1072
        %v1074 = vmul.f32 %v1069, %v1073
        %v1075 = vpack.c.bf16 %v1074, %v1074
        %v1077 = vsel %vm1017, %v1075, 0
        %vm1079 = vcmask 1043456
        %v1081 = vsel %vm1079, %v1010, 0
        %1083 = vmatprep.subr.bf16.mxu0 0
        %1084 = vmatpush1.bf16.msra.mxu0 %v1081
        %1085 = vmatprep.subr.bf16.mxu0 0
        %1086 = vmatpush1.bf16.msra.mxu0 0
        %1087 = vmatprep.subr.bf16.mxu0 0
        %1088 = vmatpush1.bf16.msra.mxu0 0
        %1089 = vmatprep.subr.bf16.mxu0 0
        %1090 = vmatpush1.bf16.msra.mxu0 0
        %1091 = vmatprep.subr.bf16.mxu0 0
        %1092 = vmatpush1.bf16.msra.mxu0 0
        %1093 = vmatprep.subr.bf16.mxu0 0
        %1094 = vmatpush1.bf16.msra.mxu0 0
        %1095 = vmatprep.subr.bf16.mxu0 0
        %1096 = vmatpush1.bf16.msra.mxu0 0
        %1097 = vmatprep.subr.bf16.mxu0 0
        %1098 = vmatpush1.bf16.msra.mxu0 0
        %1099 = vmatprep.subr.bf16.mxu0 0
        %1100 = vmatpush1.bf16.msra.mxu0 0
        %1101 = vmatprep.subr.bf16.mxu0 0
        %1102 = vmatpush1.bf16.msra.mxu0 0
        %1103 = vmatprep.subr.bf16.mxu0 0
        %1104 = vmatpush1.bf16.msra.mxu0 0
        %1105 = vmatprep.subr.bf16.mxu0 0
        %1106 = vmatpush1.bf16.msra.mxu0 0
        %1107 = vmatprep.subr.bf16.mxu0 0
        %1108 = vmatpush1.bf16.msra.mxu0 0
        %1109 = vmatprep.subr.bf16.mxu0 0
        %1110 = vmatpush1.bf16.msra.mxu0 0
        %1111 = vmatprep.subr.bf16.mxu0 0
        %1112 = vmatpush1.bf16.msra.mxu0 0
        %1113 = vmatprep.subr.bf16.mxu0 0
        %1114 = vmatpush1.bf16.msra.mxu0 0
        %1115 = vmatprep.mubr.bf16.mxu0 0
        %1116 = vmatmul.mubr.bf16.gmra.mrb[0].mxu0 %v1077
        %v1117 = vpop.f32.mrb[0].mxu0
        %v1118 = vadd.f32 0.0, %v1117
        %v1119 = vpop.f32.mrb[0].mxu0
        %v1120 = vpop.f32.mrb[0].mxu0
        %v1121 = vpop.f32.mrb[0].mxu0
        %1122 = vdwg.mxu0
        %v1123 = vpack.c.bf16 %v1118, %v1118
        %v1124 = vld [vmem:[%s10] sm:$0xf]
        %1126 = vrot.lane.b32.xlu0 %v1007, 120
        %v1127 = vpop.permute.xlu0 %1126
        %v1129 = vunpack.c.l.b16 %v1009
        %v1130 = vpack.c.b16 %v1129, %v1129
        %1131 = vrot.lane.b32.xlu0 %v1130, 120
        %v1132 = vpop.permute.xlu0 %1131
        %v1134 = vsel %vm1017, %v1127, 0
        %v1137 = vsel %vm1017, %v1132, 0
        %1139 = vmatprep.subr.bf16.mxu0 0
        %1140 = vmatpush1.bf16.xpose.msra.mxu0 %v1137
        %1141 = vmatprep.subr.bf16.mxu0 0
        %1142 = vmatpush1.bf16.xpose.msra.mxu0 0
        %1143 = vmatprep.subr.bf16.mxu0 0
        %1144 = vmatpush1.bf16.xpose.msra.mxu0 0
        %1145 = vmatprep.subr.bf16.mxu0 0
        %1146 = vmatpush1.bf16.xpose.msra.mxu0 0
        %1147 = vmatprep.subr.bf16.mxu0 0
        %1148 = vmatpush1.bf16.xpose.msra.mxu0 0
        %1149 = vmatprep.subr.bf16.mxu0 0
        %1150 = vmatpush1.bf16.xpose.msra.mxu0 0
        %1151 = vmatprep.subr.bf16.mxu0 0
        %1152 = vmatpush1.bf16.xpose.msra.mxu0 0
        %1153 = vmatprep.subr.bf16.mxu0 0
        %1154 = vmatpush1.bf16.xpose.msra.mxu0 0
        %1155 = vmatprep.subr.bf16.mxu0 0
        %1156 = vmatpush1.bf16.xpose.msra.mxu0 0
        %1157 = vmatprep.subr.bf16.mxu0 0
        %1158 = vmatpush1.bf16.xpose.msra.mxu0 0
        %1159 = vmatprep.subr.bf16.mxu0 0
        %1160 = vmatpush1.bf16.xpose.msra.mxu0 0
        %1161 = vmatprep.subr.bf16.mxu0 0
        %1162 = vmatpush1.bf16.xpose.msra.mxu0 0
        %1163 = vmatprep.subr.bf16.mxu0 0
        %1164 = vmatpush1.bf16.xpose.msra.mxu0 0
        %1165 = vmatprep.subr.bf16.mxu0 0
        %1166 = vmatpush1.bf16.xpose.msra.mxu0 0
        %1167 = vmatprep.subr.bf16.mxu0 0
        %1168 = vmatpush1.bf16.xpose.msra.mxu0 0
        %1169 = vmatprep.subr.bf16.mxu0 0
        %1170 = vmatpush1.bf16.xpose.msra.mxu0 0
        %1171 = vmatprep.mubr.bf16.mxu0 0
        %1172 = vmatmul.mubr.bf16.gmra.mrb[0].mxu0 %v1134
        %v1173 = vpop.f32.mrb[0].mxu0
        %v1174 = vadd.f32 %v1015, %v1173
        %v1175 = vpop.f32.mrb[0].mxu0
        %v1176 = vpop.f32.mrb[0].mxu0
        %v1177 = vpop.f32.mrb[0].mxu0
        %1178 = vdwg.mxu0
        %v1179 = vsel %vm1017, %v1174, -inf
        %1180 = vmax.xlane.f32.xlu0 %v1179
        %v1181 = vpop.xlane.xlu0 %1180
        %v1182 = vsub.f32 %v1174, %v1181
        %v1183 = vmul.f32 %v1182, 1.442695
        %v1184 = vpow.pop %v1183
        %v1185 = vsel %vm1017, %v1184, 0.0
        %1186 = vadd.xlane.f32.xlu0 %v1185
        %v1187 = vpop.xlane.xlu0 %1186
        %v1188 = vrcp.pop %v1187
        %v1189 = vmul.f32 %v1184, %v1188
        %v1190 = vpack.c.bf16 %v1189, %v1189
        %v1192 = vunpack.c.l.b16 %v1010
        %v1193 = vpack.c.b16 %v1192, %v1192
        %1194 = vrot.lane.b32.xlu0 %v1193, 120
        %v1195 = vpop.permute.xlu0 %1194
        %v1197 = vsel %vm1017, %v1190, 0
        %v1200 = vsel %vm1079, %v1195, 0
        %1202 = vmatprep.subr.bf16.mxu0 0
        %1203 = vmatpush1.bf16.msra.mxu0 %v1200
        %1204 = vmatprep.subr.bf16.mxu0 0
        %1205 = vmatpush1.bf16.msra.mxu0 0
        %1206 = vmatprep.subr.bf16.mxu0 0
        %1207 = vmatpush1.bf16.msra.mxu0 0
        %1208 = vmatprep.subr.bf16.mxu0 0
        %1209 = vmatpush1.bf16.msra.mxu0 0
        %1210 = vmatprep.subr.bf16.mxu0 0
        %1211 = vmatpush1.bf16.msra.mxu0 0
        %1212 = vmatprep.subr.bf16.mxu0 0
        %1213 = vmatpush1.bf16.msra.mxu0 0
        %1214 = vmatprep.subr.bf16.mxu0 0
        %1215 = vmatpush1.bf16.msra.mxu0 0
        %1216 = vmatprep.subr.bf16.mxu0 0
        %1217 = vmatpush1.bf16.msra.mxu0 0
        %1218 = vmatprep.subr.bf16.mxu0 0
        %1219 = vmatpush1.bf16.msra.mxu0 0
        %1220 = vmatprep.subr.bf16.mxu0 0
        %1221 = vmatpush1.bf16.msra.mxu0 0
        %1222 = vmatprep.subr.bf16.mxu0 0
        %1223 = vmatpush1.bf16.msra.mxu0 0
        %1224 = vmatprep.subr.bf16.mxu0 0
        %1225 = vmatpush1.bf16.msra.mxu0 0
        %1226 = vmatprep.subr.bf16.mxu0 0
        %1227 = vmatpush1.bf16.msra.mxu0 0
        %1228 = vmatprep.subr.bf16.mxu0 0
        %1229 = vmatpush1.bf16.msra.mxu0 0
        %1230 = vmatprep.subr.bf16.mxu0 0
        %1231 = vmatpush1.bf16.msra.mxu0 0
        %1232 = vmatprep.subr.bf16.mxu0 0
        %1233 = vmatpush1.bf16.msra.mxu0 0
        %1234 = vmatprep.mubr.bf16.mxu0 0
        %1235 = vmatmul.mubr.bf16.gmra.mrb[0].mxu0 %v1197
        %v1236 = vpop.f32.mrb[0].mxu0
        %v1237 = vadd.f32 0.0, %v1236
        %v1238 = vpop.f32.mrb[0].mxu0
        %v1239 = vpop.f32.mrb[0].mxu0
        %v1240 = vpop.f32.mrb[0].mxu0
        %1241 = vdwg.mxu0
        %v1242 = vpack.c.bf16 %v1237, %v1237
        %v1243 = vld [vmem:[%s10 + $0x4] sm:$0xf]
        %v1245 = vsel %vm1017, %v1242, 0
        %v1248 = vsel %vm1079, %v1243, 0
        %1250 = vmatprep.subr.bf16.mxu0 0
        %1251 = vmatpush1.bf16.msra.mxu0 %v1248
        %1252 = vmatprep.subr.bf16.mxu0 0
        %1253 = vmatpush1.bf16.msra.mxu0 0
        %1254 = vmatprep.subr.bf16.mxu0 0
        %1255 = vmatpush1.bf16.msra.mxu0 0
        %1256 = vmatprep.subr.bf16.mxu0 0
        %1257 = vmatpush1.bf16.msra.mxu0 0
        %1258 = vmatprep.subr.bf16.mxu0 0
        %1259 = vmatpush1.bf16.msra.mxu0 0
        %1260 = vmatprep.subr.bf16.mxu0 0
        %1261 = vmatpush1.bf16.msra.mxu0 0
        %1262 = vmatprep.subr.bf16.mxu0 0
        %1263 = vmatpush1.bf16.msra.mxu0 0
        %1264 = vmatprep.subr.bf16.mxu0 0
        %1265 = vmatpush1.bf16.msra.mxu0 0
        %1266 = vmatprep.subr.bf16.mxu0 0
        %1267 = vmatpush1.bf16.msra.mxu0 0
        %1268 = vmatprep.subr.bf16.mxu0 0
        %1269 = vmatpush1.bf16.msra.mxu0 0
        %1270 = vmatprep.subr.bf16.mxu0 0
        %1271 = vmatpush1.bf16.msra.mxu0 0
        %1272 = vmatprep.subr.bf16.mxu0 0
        %1273 = vmatpush1.bf16.msra.mxu0 0
        %1274 = vmatprep.subr.bf16.mxu0 0
        %1275 = vmatpush1.bf16.msra.mxu0 0
        %1276 = vmatprep.subr.bf16.mxu0 0
        %1277 = vmatpush1.bf16.msra.mxu0 0
        %1278 = vmatprep.subr.bf16.mxu0 0
        %1279 = vmatpush1.bf16.msra.mxu0 0
        %1280 = vmatprep.subr.bf16.mxu0 0
        %1281 = vmatpush1.bf16.msra.mxu0 0
        %1282 = vmatprep.mubr.bf16.mxu0 0
        %1283 = vmatmul.mubr.bf16.gmra.mrb[0].mxu0 %v1245
        %v1284 = vpop.f32.mrb[0].mxu0
        %v1285 = vadd.f32 0.0, %v1284
        %v1286 = vpop.f32.mrb[0].mxu0
        %v1287 = vpop.f32.mrb[0].mxu0
        %v1288 = vpop.f32.mrb[0].mxu0
        %1289 = vdwg.mxu0
        %v1291 = vsel %vm1017, %v1123, 0
        %v1294 = vsel %vm1079, %v1124, 0
        %1296 = vmatprep.subr.bf16.mxu0 0
        %1297 = vmatpush1.bf16.msra.mxu0 %v1294
        %1298 = vmatprep.subr.bf16.mxu0 0
        %1299 = vmatpush1.bf16.msra.mxu0 0
        %1300 = vmatprep.subr.bf16.mxu0 0
        %1301 = vmatpush1.bf16.msra.mxu0 0
        %1302 = vmatprep.subr.bf16.mxu0 0
        %1303 = vmatpush1.bf16.msra.mxu0 0
        %1304 = vmatprep.subr.bf16.mxu0 0
        %1305 = vmatpush1.bf16.msra.mxu0 0
        %1306 = vmatprep.subr.bf16.mxu0 0
        %1307 = vmatpush1.bf16.msra.mxu0 0
        %1308 = vmatprep.subr.bf16.mxu0 0
        %1309 = vmatpush1.bf16.msra.mxu0 0
        %1310 = vmatprep.subr.bf16.mxu0 0
        %1311 = vmatpush1.bf16.msra.mxu0 0
        %1312 = vmatprep.subr.bf16.mxu0 0
        %1313 = vmatpush1.bf16.msra.mxu0 0
        %1314 = vmatprep.subr.bf16.mxu0 0
        %1315 = vmatpush1.bf16.msra.mxu0 0
        %1316 = vmatprep.subr.bf16.mxu0 0
        %1317 = vmatpush1.bf16.msra.mxu0 0
        %1318 = vmatprep.subr.bf16.mxu0 0
        %1319 = vmatpush1.bf16.msra.mxu0 0
        %1320 = vmatprep.subr.bf16.mxu0 0
        %1321 = vmatpush1.bf16.msra.mxu0 0
        %1322 = vmatprep.subr.bf16.mxu0 0
        %1323 = vmatpush1.bf16.msra.mxu0 0
        %1324 = vmatprep.subr.bf16.mxu0 0
        %1325 = vmatpush1.bf16.msra.mxu0 0
        %1326 = vmatprep.subr.bf16.mxu0 0
        %1327 = vmatpush1.bf16.msra.mxu0 0
        %1328 = vmatprep.mubr.bf16.mxu0 0
        %1329 = vmatmul.mubr.bf16.gmra.mrb[0].mxu0 %v1291
        %v1330 = vpop.f32.mrb[0].mxu0
        %v1331 = vadd.f32 %v1285, %v1330
        %v1332 = vpop.f32.mrb[0].mxu0
        %v1333 = vpop.f32.mrb[0].mxu0
        %v1334 = vpop.f32.mrb[0].mxu0
        %1335 = vdwg.mxu0
        %1336 = vrot.lane.b32.xlu0 %v1007, 112
        %v1337 = vpop.permute.xlu0 %1336
        %1338 = vrot.lane.b32.xlu0 %v1130, 112
        %v1339 = vpop.permute.xlu0 %1338
        %v1341 = vsel %vm1017, %v1337, 0
        %v1344 = vsel %vm1017, %v1339, 0
        %1346 = vmatprep.subr.bf16.mxu0 0
        %1347 = vmatpush1.bf16.xpose.msra.mxu0 %v1344
        %1348 = vmatprep.subr.bf16.mxu0 0
        %1349 = vmatpush1.bf16.xpose.msra.mxu0 0
        %1350 = vmatprep.subr.bf16.mxu0 0
        %1351 = vmatpush1.bf16.xpose.msra.mxu0 0
        %1352 = vmatprep.subr.bf16.mxu0 0
        %1353 = vmatpush1.bf16.xpose.msra.mxu0 0
        %1354 = vmatprep.subr.bf16.mxu0 0
        %1355 = vmatpush1.bf16.xpose.msra.mxu0 0
        %1356 = vmatprep.subr.bf16.mxu0 0
        %1357 = vmatpush1.bf16.xpose.msra.mxu0 0
        %1358 = vmatprep.subr.bf16.mxu0 0
        %1359 = vmatpush1.bf16.xpose.msra.mxu0 0
        %1360 = vmatprep.subr.bf16.mxu0 0
        %1361 = vmatpush1.bf16.xpose.msra.mxu0 0
        %1362 = vmatprep.subr.bf16.mxu0 0
        %1363 = vmatpush1.bf16.xpose.msra.mxu0 0
        %1364 = vmatprep.subr.bf16.mxu0 0
        %1365 = vmatpush1.bf16.xpose.msra.mxu0 0
        %1366 = vmatprep.subr.bf16.mxu0 0
        %1367 = vmatpush1.bf16.xpose.msra.mxu0 0
        %1368 = vmatprep.subr.bf16.mxu0 0
        %1369 = vmatpush1.bf16.xpose.msra.mxu0 0
        %1370 = vmatprep.subr.bf16.mxu0 0
        %1371 = vmatpush1.bf16.xpose.msra.mxu0 0
        %1372 = vmatprep.subr.bf16.mxu0 0
        %1373 = vmatpush1.bf16.xpose.msra.mxu0 0
        %1374 = vmatprep.subr.bf16.mxu0 0
        %1375 = vmatpush1.bf16.xpose.msra.mxu0 0
        %1376 = vmatprep.subr.bf16.mxu0 0
        %1377 = vmatpush1.bf16.xpose.msra.mxu0 0
        %1378 = vmatprep.mubr.bf16.mxu0 0
        %1379 = vmatmul.mubr.bf16.gmra.mrb[0].mxu0 %v1341
        %v1380 = vpop.f32.mrb[0].mxu0
        %v1381 = vadd.f32 %v1015, %v1380
        %v1382 = vpop.f32.mrb[0].mxu0
        %v1383 = vpop.f32.mrb[0].mxu0
        %v1384 = vpop.f32.mrb[0].mxu0
        %1385 = vdwg.mxu0
        %v1386 = vsel %vm1017, %v1381, -inf
        %1387 = vmax.xlane.f32.xlu0 %v1386
        %v1388 = vpop.xlane.xlu0 %1387
        %v1389 = vsub.f32 %v1381, %v1388
        %v1390 = vmul.f32 %v1389, 1.442695
        %v1391 = vpow.pop %v1390
        %v1392 = vsel %vm1017, %v1391, 0.0
        %1393 = vadd.xlane.f32.xlu0 %v1392
        %v1394 = vpop.xlane.xlu0 %1393
        %v1395 = vrcp.pop %v1394
        %v1396 = vmul.f32 %v1391, %v1395
        %v1397 = vpack.c.bf16 %v1396, %v1396
        %1398 = vrot.lane.b32.xlu0 %v1193, 112
        %v1399 = vpop.permute.xlu0 %1398
        %v1401 = vsel %vm1017, %v1397, 0
        %v1404 = vsel %vm1079, %v1399, 0
        %1406 = vmatprep.subr.bf16.mxu0 0
        %1407 = vmatpush1.bf16.msra.mxu0 %v1404
        %1408 = vmatprep.subr.bf16.mxu0 0
        %1409 = vmatpush1.bf16.msra.mxu0 0
        %1410 = vmatprep.subr.bf16.mxu0 0
        %1411 = vmatpush1.bf16.msra.mxu0 0
        %1412 = vmatprep.subr.bf16.mxu0 0
        %1413 = vmatpush1.bf16.msra.mxu0 0
        %1414 = vmatprep.subr.bf16.mxu0 0
        %1415 = vmatpush1.bf16.msra.mxu0 0
        %1416 = vmatprep.subr.bf16.mxu0 0
        %1417 = vmatpush1.bf16.msra.mxu0 0
        %1418 = vmatprep.subr.bf16.mxu0 0
        %1419 = vmatpush1.bf16.msra.mxu0 0
        %1420 = vmatprep.subr.bf16.mxu0 0
        %1421 = vmatpush1.bf16.msra.mxu0 0
        %1422 = vmatprep.subr.bf16.mxu0 0
        %1423 = vmatpush1.bf16.msra.mxu0 0
        %1424 = vmatprep.subr.bf16.mxu0 0
        %1425 = vmatpush1.bf16.msra.mxu0 0
        %1426 = vmatprep.subr.bf16.mxu0 0
        %1427 = vmatpush1.bf16.msra.mxu0 0
        %1428 = vmatprep.subr.bf16.mxu0 0
        %1429 = vmatpush1.bf16.msra.mxu0 0
        %1430 = vmatprep.subr.bf16.mxu0 0
        %1431 = vmatpush1.bf16.msra.mxu0 0
        %1432 = vmatprep.subr.bf16.mxu0 0
        %1433 = vmatpush1.bf16.msra.mxu0 0
        %1434 = vmatprep.subr.bf16.mxu0 0
        %1435 = vmatpush1.bf16.msra.mxu0 0
        %1436 = vmatprep.subr.bf16.mxu0 0
        %1437 = vmatpush1.bf16.msra.mxu0 0
        %1438 = vmatprep.mubr.bf16.mxu0 0
        %1439 = vmatmul.mubr.bf16.gmra.mrb[0].mxu0 %v1401
        %v1440 = vpop.f32.mrb[0].mxu0
        %v1441 = vadd.f32 0.0, %v1440
        %v1442 = vpop.f32.mrb[0].mxu0
        %v1443 = vpop.f32.mrb[0].mxu0
        %v1444 = vpop.f32.mrb[0].mxu0
        %1445 = vdwg.mxu0
        %v1446 = vpack.c.bf16 %v1441, %v1441
        %v1447 = vld [vmem:[%s10 + $0x8] sm:$0xf]
        %v1449 = vsel %vm1017, %v1446, 0
        %v1452 = vsel %vm1079, %v1447, 0
        %1454 = vmatprep.subr.bf16.mxu0 0
        %1455 = vmatpush1.bf16.msra.mxu0 %v1452
        %1456 = vmatprep.subr.bf16.mxu0 0
        %1457 = vmatpush1.bf16.msra.mxu0 0
        %1458 = vmatprep.subr.bf16.mxu0 0
        %1459 = vmatpush1.bf16.msra.mxu0 0
        %1460 = vmatprep.subr.bf16.mxu0 0
        %1461 = vmatpush1.bf16.msra.mxu0 0
        %1462 = vmatprep.subr.bf16.mxu0 0
        %1463 = vmatpush1.bf16.msra.mxu0 0
        %1464 = vmatprep.subr.bf16.mxu0 0
        %1465 = vmatpush1.bf16.msra.mxu0 0
        %1466 = vmatprep.subr.bf16.mxu0 0
        %1467 = vmatpush1.bf16.msra.mxu0 0
        %1468 = vmatprep.subr.bf16.mxu0 0
        %1469 = vmatpush1.bf16.msra.mxu0 0
        %1470 = vmatprep.subr.bf16.mxu0 0
        %1471 = vmatpush1.bf16.msra.mxu0 0
        %1472 = vmatprep.subr.bf16.mxu0 0
        %1473 = vmatpush1.bf16.msra.mxu0 0
        %1474 = vmatprep.subr.bf16.mxu0 0
        %1475 = vmatpush1.bf16.msra.mxu0 0
        %1476 = vmatprep.subr.bf16.mxu0 0
        %1477 = vmatpush1.bf16.msra.mxu0 0
        %1478 = vmatprep.subr.bf16.mxu0 0
        %1479 = vmatpush1.bf16.msra.mxu0 0
        %1480 = vmatprep.subr.bf16.mxu0 0
        %1481 = vmatpush1.bf16.msra.mxu0 0
        %1482 = vmatprep.subr.bf16.mxu0 0
        %1483 = vmatpush1.bf16.msra.mxu0 0
        %1484 = vmatprep.subr.bf16.mxu0 0
        %1485 = vmatpush1.bf16.msra.mxu0 0
        %1486 = vmatprep.mubr.bf16.mxu0 0
        %1487 = vmatmul.mubr.bf16.gmra.mrb[0].mxu0 %v1449
        %v1488 = vpop.f32.mrb[0].mxu0
        %v1489 = vadd.f32 0.0, %v1488
        %v1490 = vpop.f32.mrb[0].mxu0
        %v1491 = vpop.f32.mrb[0].mxu0
        %v1492 = vpop.f32.mrb[0].mxu0
        %1493 = vdwg.mxu0
        %v1494 = vadd.f32 %v1331, %v1489
        %1495 = vrot.lane.b32.xlu0 %v1007, 104
        %v1496 = vpop.permute.xlu0 %1495
        %1497 = vrot.lane.b32.xlu0 %v1130, 104
        %v1498 = vpop.permute.xlu0 %1497
        %v1500 = vsel %vm1017, %v1496, 0
        %v1503 = vsel %vm1017, %v1498, 0
        %1505 = vmatprep.subr.bf16.mxu0 0
        %1506 = vmatpush1.bf16.xpose.msra.mxu0 %v1503
        %1507 = vmatprep.subr.bf16.mxu0 0
        %1508 = vmatpush1.bf16.xpose.msra.mxu0 0
        %1509 = vmatprep.subr.bf16.mxu0 0
        %1510 = vmatpush1.bf16.xpose.msra.mxu0 0
        %1511 = vmatprep.subr.bf16.mxu0 0
        %1512 = vmatpush1.bf16.xpose.msra.mxu0 0
        %1513 = vmatprep.subr.bf16.mxu0 0
        %1514 = vmatpush1.bf16.xpose.msra.mxu0 0
        %1515 = vmatprep.subr.bf16.mxu0 0
        %1516 = vmatpush1.bf16.xpose.msra.mxu0 0
        %1517 = vmatprep.subr.bf16.mxu0 0
        %1518 = vmatpush1.bf16.xpose.msra.mxu0 0
        %1519 = vmatprep.subr.bf16.mxu0 0
        %1520 = vmatpush1.bf16.xpose.msra.mxu0 0
        %1521 = vmatprep.subr.bf16.mxu0 0
        %1522 = vmatpush1.bf16.xpose.msra.mxu0 0
        %1523 = vmatprep.subr.bf16.mxu0 0
        %1524 = vmatpush1.bf16.xpose.msra.mxu0 0
        %1525 = vmatprep.subr.bf16.mxu0 0
        %1526 = vmatpush1.bf16.xpose.msra.mxu0 0
        %1527 = vmatprep.subr.bf16.mxu0 0
        %1528 = vmatpush1.bf16.xpose.msra.mxu0 0
        %1529 = vmatprep.subr.bf16.mxu0 0
        %1530 = vmatpush1.bf16.xpose.msra.mxu0 0
        %1531 = vmatprep.subr.bf16.mxu0 0
        %1532 = vmatpush1.bf16.xpose.msra.mxu0 0
        %1533 = vmatprep.subr.bf16.mxu0 0
        %1534 = vmatpush1.bf16.xpose.msra.mxu0 0
        %1535 = vmatprep.subr.bf16.mxu0 0
        %1536 = vmatpush1.bf16.xpose.msra.mxu0 0
        %1537 = vmatprep.mubr.bf16.mxu0 0
        %1538 = vmatmul.mubr.bf16.gmra.mrb[0].mxu0 %v1500
        %v1539 = vpop.f32.mrb[0].mxu0
        %v1540 = vadd.f32 %v1015, %v1539
        %v1541 = vpop.f32.mrb[0].mxu0
        %v1542 = vpop.f32.mrb[0].mxu0
        %v1543 = vpop.f32.mrb[0].mxu0
        %1544 = vdwg.mxu0
        %v1545 = vsel %vm1017, %v1540, -inf
        %1546 = vmax.xlane.f32.xlu0 %v1545
        %v1547 = vpop.xlane.xlu0 %1546
        %v1548 = vsub.f32 %v1540, %v1547
        %v1549 = vmul.f32 %v1548, 1.442695
        %v1550 = vpow.pop %v1549
        %v1551 = vsel %vm1017, %v1550, 0.0
        %1552 = vadd.xlane.f32.xlu0 %v1551
        %v1553 = vpop.xlane.xlu0 %1552
        %v1554 = vrcp.pop %v1553
        %v1555 = vmul.f32 %v1550, %v1554
        %v1556 = vpack.c.bf16 %v1555, %v1555
        %1557 = vrot.lane.b32.xlu0 %v1193, 104
        %v1558 = vpop.permute.xlu0 %1557
        %v1560 = vsel %vm1017, %v1556, 0
        %v1563 = vsel %vm1079, %v1558, 0
        %1565 = vmatprep.subr.bf16.mxu0 0
        %1566 = vmatpush1.bf16.msra.mxu0 %v1563
        %1567 = vmatprep.subr.bf16.mxu0 0
        %1568 = vmatpush1.bf16.msra.mxu0 0
        %1569 = vmatprep.subr.bf16.mxu0 0
        %1570 = vmatpush1.bf16.msra.mxu0 0
        %1571 = vmatprep.subr.bf16.mxu0 0
        %1572 = vmatpush1.bf16.msra.mxu0 0
        %1573 = vmatprep.subr.bf16.mxu0 0
        %1574 = vmatpush1.bf16.msra.mxu0 0
        %1575 = vmatprep.subr.bf16.mxu0 0
        %1576 = vmatpush1.bf16.msra.mxu0 0
        %1577 = vmatprep.subr.bf16.mxu0 0
        %1578 = vmatpush1.bf16.msra.mxu0 0
        %1579 = vmatprep.subr.bf16.mxu0 0
        %1580 = vmatpush1.bf16.msra.mxu0 0
        %1581 = vmatprep.subr.bf16.mxu0 0
        %1582 = vmatpush1.bf16.msra.mxu0 0
        %1583 = vmatprep.subr.bf16.mxu0 0
        %1584 = vmatpush1.bf16.msra.mxu0 0
        %1585 = vmatprep.subr.bf16.mxu0 0
        %1586 = vmatpush1.bf16.msra.mxu0 0
        %1587 = vmatprep.subr.bf16.mxu0 0
        %1588 = vmatpush1.bf16.msra.mxu0 0
        %1589 = vmatprep.subr.bf16.mxu0 0
        %1590 = vmatpush1.bf16.msra.mxu0 0
        %1591 = vmatprep.subr.bf16.mxu0 0
        %1592 = vmatpush1.bf16.msra.mxu0 0
        %1593 = vmatprep.subr.bf16.mxu0 0
        %1594 = vmatpush1.bf16.msra.mxu0 0
        %1595 = vmatprep.subr.bf16.mxu0 0
        %1596 = vmatpush1.bf16.msra.mxu0 0
        %1597 = vmatprep.mubr.bf16.mxu0 0
        %1598 = vmatmul.mubr.bf16.gmra.mrb[0].mxu0 %v1560
        %v1599 = vpop.f32.mrb[0].mxu0
        %v1600 = vadd.f32 0.0, %v1599
        %v1601 = vpop.f32.mrb[0].mxu0
        %v1602 = vpop.f32.mrb[0].mxu0
        %v1603 = vpop.f32.mrb[0].mxu0
        %1604 = vdwg.mxu0
        %v1605 = vpack.c.bf16 %v1600, %v1600
        %v1606 = vld [vmem:[%s10 + $0xc] sm:$0xf]
        %v1608 = vsel %vm1017, %v1605, 0
        %v1611 = vsel %vm1079, %v1606, 0
        %1613 = vmatprep.subr.bf16.mxu0 0
        %1614 = vmatpush1.bf16.msra.mxu0 %v1611
        %1615 = vmatprep.subr.bf16.mxu0 0
        %1616 = vmatpush1.bf16.msra.mxu0 0
        %1617 = vmatprep.subr.bf16.mxu0 0
        %1618 = vmatpush1.bf16.msra.mxu0 0
        %1619 = vmatprep.subr.bf16.mxu0 0
        %1620 = vmatpush1.bf16.msra.mxu0 0
        %1621 = vmatprep.subr.bf16.mxu0 0
        %1622 = vmatpush1.bf16.msra.mxu0 0
        %1623 = vmatprep.subr.bf16.mxu0 0
        %1624 = vmatpush1.bf16.msra.mxu0 0
        %1625 = vmatprep.subr.bf16.mxu0 0
        %1626 = vmatpush1.bf16.msra.mxu0 0
        %1627 = vmatprep.subr.bf16.mxu0 0
        %1628 = vmatpush1.bf16.msra.mxu0 0
        %1629 = vmatprep.subr.bf16.mxu0 0
        %1630 = vmatpush1.bf16.msra.mxu0 0
        %1631 = vmatprep.subr.bf16.mxu0 0
        %1632 = vmatpush1.bf16.msra.mxu0 0
        %1633 = vmatprep.subr.bf16.mxu0 0
        %1634 = vmatpush1.bf16.msra.mxu0 0
        %1635 = vmatprep.subr.bf16.mxu0 0
        %1636 = vmatpush1.bf16.msra.mxu0 0
        %1637 = vmatprep.subr.bf16.mxu0 0
        %1638 = vmatpush1.bf16.msra.mxu0 0
        %1639 = vmatprep.subr.bf16.mxu0 0
        %1640 = vmatpush1.bf16.msra.mxu0 0
        %1641 = vmatprep.subr.bf16.mxu0 0
        %1642 = vmatpush1.bf16.msra.mxu0 0
        %1643 = vmatprep.subr.bf16.mxu0 0
        %1644 = vmatpush1.bf16.msra.mxu0 0
        %1645 = vmatprep.mubr.bf16.mxu0 0
        %1646 = vmatmul.mubr.bf16.gmra.mrb[0].mxu0 %v1608
        %v1647 = vpop.f32.mrb[0].mxu0
        %v1648 = vadd.f32 0.0, %v1647
        %v1649 = vpop.f32.mrb[0].mxu0
        %v1650 = vpop.f32.mrb[0].mxu0
        %v1651 = vpop.f32.mrb[0].mxu0
        %1652 = vdwg.mxu0
        %v1653 = vadd.f32 %v1494, %v1648
        %v1654 = vadd.f32 %v902, %v1653
        %v1655 = vld [vmem:[#allocation15] sm:$0x1]
        %v1657 = vlaneseq
        %v1658 = vshrl.u32 %v1657, 7
        %v1659 = vsub.s32 0, %v1658
        %v1660 = vrot.slane %v1655, %v1659
        %v1662 = vadd.f32 %v1654, %v1660
        %v1663 = vld [vmem:[#allocation16] sm:$0x1]
        %v1664 = vld [vmem:[#allocation18] sm:$0x1]
        %v1665 = vsel %vm903, %v1662, 0.0
        %1666 = vadd.xlane.f32.xlu0 %v1665
        %v1667 = vpop.xlane.xlu0 %1666
        %v1668 = vmul.f32 %v1667, %v907
        %v1669 = vsub.f32 %v1662, %v1668
        %v1670 = vmul.f32 %v1669, %v1669
        %v1671 = vsel %vm903, %v1670, 0.0
        %1672 = vadd.xlane.f32.xlu0 %v1671
        %v1673 = vpop.xlane.xlu0 %1672
        %v1674 = vmul.f32 %v1673, 0.032258064
        %v1675 = vrsqrt.pop %v1674
        %v1676 = vmul.f32 %v1674, %v1675
        %vm1677 = vcmp.eq.f32.partialorder %v1674, inf
        %v1678 = vsel %vm1677, %v1674, %v1676
        %vm1679 = vcmp.eq.f32.partialorder %v1674, 0.0
        %v1680 = vand.u32 %v1674, 2147483648
        %v1681 = vsel %vm1679, %v1680, %v1678
        %v1682 = vadd.f32 %v1681, 1e-06
        %v1683 = vrcp.pop %v1682
        %v1684 = vmul.f32 %v1669, %v1683
        %v1686 = vlaneseq
        %v1687 = vshrl.u32 %v1686, 7
        %v1688 = vsub.s32 0, %v1687
        %v1689 = vrot.slane %v1663, %v1688
        %v1691 = vmul.f32 %v1684, %v1689
        %v1693 = vlaneseq
        %v1694 = vshrl.u32 %v1693, 7
        %v1695 = vsub.s32 0, %v1694
        %v1696 = vrot.slane %v1664, %v1695
        %v1698 = vadd.f32 %v1691, %v1696
        %v1699 = vpack.c.bf16 %v1698, %v1698
        %v1700 = vld [vmem:[%s14] sm:$0xf]
        %v1701 = vld [vmem:[%s14 + $0x4] sm:$0xf]
        %v1702 = vld [vmem:[%s14 + $0x8] sm:$0xf]
        %v1703 = vld [vmem:[%s14 + $0xc] sm:$0xf]
        %v1704 = vld [vmem:[%s15] sm:$0x1]
        %v1706 = vlaneseq
        %v1707 = vshrl.u32 %v1706, 7
        %v1708 = vsub.s32 0, %v1707
        %v1709 = vrot.slane %v1704, %v1708
        %v1715 = vunpack.c.l.b16 %v1700
        %v1716 = vunpack.c.l.b16 %v1701
        %v1717 = vunpack.c.l.b16 %v1702
        %v1718 = vunpack.c.l.b16 %v1703
        %v1719 = vpack.c.b16 %v1716, %v1715
        %v1720 = vpack.c.b16 %v1718, %v1717
        %v1724 = vsel %vm903, %v1699, 0
        %1726 = vmatprep.subr.bf16.mxu0 0
        %1727 = vmatpush1.bf16.msra.mxu0 %v1719
        %1728 = vmatprep.subr.bf16.mxu0 0
        %1729 = vmatpush1.bf16.msra.mxu0 %v1720
        %1730 = vmatprep.subr.bf16.mxu0 0
        %1731 = vmatpush1.bf16.msra.mxu0 0
        %1732 = vmatprep.subr.bf16.mxu0 0
        %1733 = vmatpush1.bf16.msra.mxu0 0
        %1734 = vmatprep.subr.bf16.mxu0 0
        %1735 = vmatpush1.bf16.msra.mxu0 0
        %1736 = vmatprep.subr.bf16.mxu0 0
        %1737 = vmatpush1.bf16.msra.mxu0 0
        %1738 = vmatprep.subr.bf16.mxu0 0
        %1739 = vmatpush1.bf16.msra.mxu0 0
        %1740 = vmatprep.subr.bf16.mxu0 0
        %1741 = vmatpush1.bf16.msra.mxu0 0
        %1742 = vmatprep.subr.bf16.mxu0 0
        %1743 = vmatpush1.bf16.msra.mxu0 0
        %1744 = vmatprep.subr.bf16.mxu0 0
        %1745 = vmatpush1.bf16.msra.mxu0 0
        %1746 = vmatprep.subr.bf16.mxu0 0
        %1747 = vmatpush1.bf16.msra.mxu0 0
        %1748 = vmatprep.subr.bf16.mxu0 0
        %1749 = vmatpush1.bf16.msra.mxu0 0
        %1750 = vmatprep.subr.bf16.mxu0 0
        %1751 = vmatpush1.bf16.msra.mxu0 0
        %1752 = vmatprep.subr.bf16.mxu0 0
        %1753 = vmatpush1.bf16.msra.mxu0 0
        %1754 = vmatprep.subr.bf16.mxu0 0
        %1755 = vmatpush1.bf16.msra.mxu0 0
        %1756 = vmatprep.subr.bf16.mxu0 0
        %1757 = vmatpush1.bf16.msra.mxu0 0
        %1758 = vmatprep.mubr.bf16.mxu0 0
        %1759 = vmatmul.mubr.bf16.gmra.mrb[0].mxu0 %v1724
        %v1760 = vpop.f32.mrb[0].mxu0
        %v1761 = vadd.f32 %v1709, %v1760
        %v1762 = vpop.f32.mrb[0].mxu0
        %v1763 = vpop.f32.mrb[0].mxu0
        %v1764 = vpop.f32.mrb[0].mxu0
        %1765 = vdwg.mxu0
        %v1766 = vmax.f32 %v1761, 0.0
        %v1767 = vpack.c.bf16 %v1766, %v1766
        %v1768 = vld [vmem:[%s16] sm:$0xf]
        %v1769 = vld [vmem:[%s16 + $0x4] sm:$0xf]
        %v1770 = vld [vmem:[%s16 + $0x8] sm:$0xf]
        %v1771 = vld [vmem:[%s16 + $0xc] sm:$0xf]
        %v1772 = vld [vmem:[%s16 + $0x10] sm:$0xf]
        %v1773 = vld [vmem:[%s16 + $0x14] sm:$0xf]
        %v1774 = vld [vmem:[%s16 + $0x18] sm:$0xf]
        %v1775 = vld [vmem:[%s16 + $0x1c] sm:$0xf]
        %v1776 = vld [vmem:[%s17] sm:$0x1]
        %v1778 = vlaneseq
        %v1779 = vshrl.u32 %v1778, 7
        %v1780 = vsub.s32 0, %v1779
        %v1781 = vrot.slane %v1776, %v1780
        %v1791 = vunpack.c.l.b16 %v1768
        %v1792 = vunpack.c.l.b16 %v1769
        %v1793 = vunpack.c.l.b16 %v1770
        %v1794 = vunpack.c.l.b16 %v1771
        %v1795 = vunpack.c.l.b16 %v1772
        %v1796 = vunpack.c.l.b16 %v1773
        %v1797 = vunpack.c.l.b16 %v1774
        %v1798 = vunpack.c.l.b16 %v1775
        %v1799 = vpack.c.b16 %v1792, %v1791
        %v1800 = vpack.c.b16 %v1794, %v1793
        %v1801 = vpack.c.b16 %v1796, %v1795
        %v1802 = vpack.c.b16 %v1798, %v1797
        %vm1807 = vcmask 523264
        %v1809 = vsel %vm1807, %v1767, 0
        %1811 = vmatprep.subr.bf16.mxu0 0
        %1812 = vmatpush1.bf16.msra.mxu0 %v1799
        %1813 = vmatprep.subr.bf16.mxu0 0
        %1814 = vmatpush1.bf16.msra.mxu0 %v1800
        %1815 = vmatprep.subr.bf16.mxu0 0
        %1816 = vmatpush1.bf16.msra.mxu0 %v1801
        %1817 = vmatprep.subr.bf16.mxu0 0
        %1818 = vmatpush1.bf16.msra.mxu0 %v1802
        %1819 = vmatprep.subr.bf16.mxu0 0
        %1820 = vmatpush1.bf16.msra.mxu0 0
        %1821 = vmatprep.subr.bf16.mxu0 0
        %1822 = vmatpush1.bf16.msra.mxu0 0
        %1823 = vmatprep.subr.bf16.mxu0 0
        %1824 = vmatpush1.bf16.msra.mxu0 0
        %1825 = vmatprep.subr.bf16.mxu0 0
        %1826 = vmatpush1.bf16.msra.mxu0 0
        %1827 = vmatprep.subr.bf16.mxu0 0
        %1828 = vmatpush1.bf16.msra.mxu0 0
        %1829 = vmatprep.subr.bf16.mxu0 0
        %1830 = vmatpush1.bf16.msra.mxu0 0
        %1831 = vmatprep.subr.bf16.mxu0 0
        %1832 = vmatpush1.bf16.msra.mxu0 0
        %1833 = vmatprep.subr.bf16.mxu0 0
        %1834 = vmatpush1.bf16.msra.mxu0 0
        %1835 = vmatprep.subr.bf16.mxu0 0
        %1836 = vmatpush1.bf16.msra.mxu0 0
        %1837 = vmatprep.subr.bf16.mxu0 0
        %1838 = vmatpush1.bf16.msra.mxu0 0
        %1839 = vmatprep.subr.bf16.mxu0 0
        %1840 = vmatpush1.bf16.msra.mxu0 0
        %1841 = vmatprep.subr.bf16.mxu0 0
        %1842 = vmatpush1.bf16.msra.mxu0 0
        %1843 = vmatprep.mubr.bf16.mxu0 0
        %1844 = vmatmul.mubr.bf16.gmra.mrb[0].mxu0 %v1809
        %v1845 = vpop.f32.mrb[0].mxu0
        %v1846 = vadd.f32 %v1781, %v1845
        %v1847 = vpop.f32.mrb[0].mxu0
        %v1848 = vpop.f32.mrb[0].mxu0
        %v1849 = vpop.f32.mrb[0].mxu0
        %1850 = vdwg.mxu0
        %v1851 = vadd.f32 %v1662, %v1846
        %1852 = vst.msk [vmem:[%s716] sm:$0xff] %vm903, %v1851
        %s1853 = sand.u32 %s449, 1
        %s1854 = scalar_lea.sflag [#allocation6], %s1853
        %s1855 = sand.u32 %s449, 1
        %s1856 = smul.addr %s1855, 8
        %s1857 = scalar_lea.vmem [#allocation19], %s1856
        // Predicated region
        $region133: #{tpu_custom_call.1} parent=91 // pred_check
          %p1858 = pneg %p459
        $region134: #{tpu_custom_call.1} parent=91 // pred_check_branch
          %1860 = sbr.rel (%p1858) target = $region136
        $region135: #{tpu_custom_call.1} parent=91 // pred_region
          %s1862 = ssub.s32 128, 128
          %1863 = vsyncadd %s1854, %s1862
          %s1864 = sadd.s32 %s44, %s43
          %s1865 = smul.addr %s1864, 128
          %s1866 = scalar_lea.hbm %s18, %s1865
          %s1868 = sshll.u32 %s1857, 4
          %s1869 = int_to_ptr.vmem [resolvable:$true] %s1868
          %1871 = dma.vmem_to_hbm [thread:$0]  %s1869, 128, %s1866, %s1854
        $region136: #{tpu_custom_call.1} parent=91 // pred_fallthru
          _
      $region92: #{tpu_custom_call.1} parent=5 // pred_fallthru
        _
      %p1872 = scmp.le.s32.totalorder 2, %s34
      // Predicated region
      $region137: #{tpu_custom_call.1} parent=5 // pred_check
        %p1873 = pneg %p1872
      $region138: #{tpu_custom_call.1} parent=5 // pred_check_branch
        %1875 = sbr.rel (%p1873) target = $region140
      $region139: #{tpu_custom_call.1} parent=5 // pred_region
        %s1876 = ssub.s32 %s34, 2
        // Predicated region
        $region141: #{tpu_custom_call.1} parent=139 // pred_check
          %p1877 = pneg %p465
        $region142: #{tpu_custom_call.1} parent=139 // pred_check_branch
          %1879 = sbr.rel (%p1877) target = $region144
        $region143: #{tpu_custom_call.1} parent=139 // pred_region
          %s1880 = sand.u32 %s450, 1
          %s1881 = scalar_lea.sflag [#allocation6], %s1880
          %s1882 = sand.u32 %s450, 1
          %s1883 = smul.addr %s1882, 8
          %s1884 = scalar_lea.vmem [#allocation19], %s1883
          %1885 = dma.done %s1881, 128
        $region144: #{tpu_custom_call.1} parent=139 // pred_fallthru
          _
      $region140: #{tpu_custom_call.1} parent=5 // pred_fallthru
        _
    $region6: #{tpu_custom_call.1} parent=1 // loop_footer
      %s38 = sadd.s32 1, %s34
    $region7: #{tpu_custom_call.1} parent=1 // loop_footer_branch
      %33 = sbr.rel target = $region3
    $region8: #{tpu_custom_call.1} parent=1 // loop_exit
      _
    %1886 = vsyncpa [#allocation5], 1
    %s1887 = scalar_lea.sflag [#allocation5], 1
    %1888 = vsyncpa %s1887, 1
    %1889 = vsyncpa [#allocation8], 1
    %1890 = vsyncpa [#allocation11], 1
    %1891 = vsyncpa [#allocation14], 1
    %1892 = vsyncpa [#allocation17], 1
    %1893 = vsyncpa [#allocation6], 1
    %s1894 = scalar_lea.sflag [#allocation6], 1
    %1895 = vsyncpa %s1894, 1

</llo_original>
